<compile_context>
chip_gen: v7x
topology: tpu7x:2x2x1
jax: 0.10.0
libtpu: 0.0.40
codegen_flags: <defaults>
</compile_context>

<pallas_src>
import functools

import jax
import jax.numpy as jnp
from jax import lax
from jax.experimental import pallas as pl
from jax.experimental.pallas import tpu as pltpu

HIDDEN = 2048
LN_EPS = 1e-5  # PyTorch nn.LayerNorm default


# --------------------------- chip / feature detection ---------------------------

@functools.lru_cache(maxsize=None)
def _vmem_capacity_bytes():
    try:
        return int(pltpu.get_tpu_info().vmem_capacity_bytes)
    except Exception:
        return 64 << 20  # conservative fallback = v7x per-TC VMEM


@functools.lru_cache(maxsize=None)
def _chip_flags():
    """Returns (num_tensorcores_per_chip, has_bf16_valu)."""
    try:
        kind = jax.devices()[0].device_kind.lower()
    except Exception:
        kind = ""
    is_v7 = "v7" in kind
    is_v5e = ("v5e" in kind) or ("v5 lite" in kind) or ("v5litepod" in kind)
    num_tc = 2 if is_v7 else 1          # v7x megacore
    bf16_valu = not is_v5e              # v6e/v7x have bf16 VALU; v5e does not
    return num_tc, bf16_valu


def _probe_buffered():
    try:
        pl.BlockSpec((8, 128), lambda i: (0, 0), pipeline_mode=pl.Buffered(1))
        return True
    except TypeError:
        return False


_HAS_BUFFERED = _probe_buffered()


def _resident_spec(shape):
    """Grid-invariant operand: fetched once, single VMEM buffer when supported."""
    if _HAS_BUFFERED:
        return pl.BlockSpec(shape, lambda i: (0, 0), pipeline_mode=pl.Buffered(1))
    return pl.BlockSpec(shape, lambda i: (0, 0))


# --------------------------------- kernel ---------------------------------------

def _ln_stats(x):
    """One-pass LayerNorm stats in f32: returns (mu, rstd)."""
    inv_n = 1.0 / x.shape[-1]
    mu = jnp.sum(x, axis=-1, keepdims=True) * inv_n
    ex2 = jnp.sum(x * x, axis=-1, keepdims=True) * inv_n
    var = jnp.maximum(ex2 - mu * mu, 0.0)
    return mu, lax.rsqrt(var + LN_EPS)


def _to_clip_mlp_kernel(x_ref, w1_ref, p1_ref, w2_ref, p2_ref, o_ref, *, ln1_bf16):
    mxu_dt = w1_ref.dtype
    x = x_ref[...].astype(mxu_dt)

    p1 = p1_ref[...]                       # (3, HIDDEN) f32: [bias; gamma; beta]
    b1, g1, be1 = p1[0:1, :], p1[1:2, :], p1[2:3, :]

    # fc1: (tm, d_in) @ (d_in, 2048) on the MXU, bf16 inputs, f32 accumulation.
    h = jnp.dot(x, w1_ref[...], preferred_element_type=jnp.float32) + b1

    # layer_norm1 stats in f32.
    mu1, rstd1 = _ln_stats(h)
    if ln1_bf16:
        # Normalize + affine + ReLU on packed bf16 vregs (v6e/v7x bf16 VALU);
        # result feeds the bf16 fc2 matmul anyway.
        cdt = w2_ref.dtype
        hn = (h - mu1).astype(cdt) * rstd1.astype(cdt) * g1.astype(cdt) + be1.astype(cdt)
        hn = jnp.maximum(hn, 0.0).astype(w2_ref.dtype)
    else:
        hn = jnp.maximum((h - mu1) * rstd1 * g1 + be1, 0.0).astype(w2_ref.dtype)

    p2 = p2_ref[...]                       # (3, d_out) f32: [bias; gamma; beta]
    b2, g2, be2 = p2[0:1, :], p2[1:2, :], p2[2:3, :]

    # fc2: (tm, 2048) @ (2048, d_out) on the MXU.
    y = jnp.dot(hn, w2_ref[...], preferred_element_type=jnp.float32) + b2

    # layer_norm2 (f32, 4-op normalize form).
    mu2, rstd2 = _ln_stats(y)
    y = (y - mu2) * rstd2 * g2 + be2
    o_ref[...] = y.astype(o_ref.dtype)


# ------------------------------ tiling helpers -----------------------------------

def _round_up(a, b):
    return ((a + b - 1) // b) * b


def _resident_bytes(d_in, d_out, w_bytes):
    # bf16 weights + packed LN/bias params (f32, 3 rows padded to 8 sublanes).
    return (d_in * HIDDEN + HIDDEN * d_out) * w_bytes + 8 * (HIDDEN + d_out) * 4


def _tile_bytes(tm, d_in, d_out, x_bytes, o_bytes):
    # Double-buffered x/out tiles + f32/bf16 hidden intermediates.
    return 2 * tm * (d_in * x_bytes + d_out * o_bytes) + 2 * tm * HIDDEN * 4


def _choose_tm(M, d_in, d_out, w_bytes, x_bytes, o_bytes,
               vmem_budget, num_tc, resident_mult):
    """Largest row tile fitting the VMEM budget, respecting per-chip grid rules."""
    resident = resident_mult * _resident_bytes(d_in, d_out, w_bytes)
    m_up = _round_up(M, 8)
    # v7x megacore: keep >= 4 grid steps (>= 2 per TensorCore) so each core can
    # still pipeline DMAs; single-TC v5e/v6e: fewer, larger steps are best.
    min_steps = 4 if num_tc > 1 else 1
    best = 8
    for cand in (8, 16, 32, 64, 128, 256, 512, 1024, 2048):
        if cand > m_up:
            break
        if resident + _tile_bytes(cand, d_in, d_out, x_bytes, o_bytes) > vmem_budget:
            break
        if cand > 8 and pl.cdiv(M, cand) < min_steps:
            break
        best = cand
    return min(best, m_up)


# --------------------------------- wrapper ---------------------------------------

def prepare_params(params, mxu_dtype=jnp.bfloat16):
    """One-time (outside jit) prep: bf16 weights + packed f32 LN/bias params."""
    w1, b1, g1, be1, w2, b2, g2, be2 = params
    w1c = jnp.asarray(w1, mxu_dtype)
    w2c = jnp.asarray(w2, mxu_dtype)
    p1 = jnp.stack([b1, g1, be1]).astype(jnp.float32)   # (3, HIDDEN)
    p2 = jnp.stack([b2, g2, be2]).astype(jnp.float32)   # (3, d_out)
    return w1c, p1, w2c, p2


@functools.partial(jax.jit, static_argnames=("tm", "out_dtype"))
def to_clip_mlp(x, prepared_params, *, tm=None, out_dtype=None):
    """x: (..., d_in) -> (..., d_out). Fused fc1 + LN + ReLU + fc2 + LN."""
    w1, p1, w2, p2 = prepared_params
    d_in, d_out = w1.shape[0], w2.shape[1]
    out_dtype = x.dtype if out_dtype is None else jnp.dtype(out_dtype)

    lead = x.shape[:-1]
    xm = x.reshape(-1, d_in)
    M = xm.shape[0]

    num_tc, bf16_valu = _chip_flags()
    vmem_cap = _vmem_capacity_bytes()
    vmem_budget = (vmem_cap * 3) // 4          # ~48 MiB v7x, ~96 MiB v5e/v6e
    resident_mult = 1 if _HAS_BUFFERED else 2  # fallback double-buffers residents

    w_bytes = w1.dtype.itemsize
    x_bytes = xm.dtype.itemsize
    o_bytes = jnp.dtype(out_dtype).itemsize

    if tm is None:
        tm = _choose_tm(M, d_in, d_out, w_bytes, x_bytes, o_bytes,
                        vmem_budget, num_tc, resident_mult)
    grid_m = pl.cdiv(M, tm)
    if num_tc > 1 and grid_m > 1 and grid_m % 2:
        grid_m += 1                             # even grid -> balanced v7x megacore
    m_pad = grid_m * tm
    if m_pad != M:                              # pad rows; sliced back at the end
        xm = jnp.pad(xm, ((0, m_pad - M), (0, 0)))

    footprint = (resident_mult * _resident_bytes(d_in, d_out, w_bytes)
                 + _tile_bytes(tm, d_in, d_out, x_bytes, o_bytes))
    vmem_limit = int(min(max(int(1.25 * footprint) + (4 << 20), 32 << 20), vmem_cap))

    cost = pl.CostEstimate(
        flops=2 * m_pad * HIDDEN * (d_in + d_out),
        transcendentals=2 * m_pad,  # one rsqrt per row per LayerNorm
        bytes_accessed=(m_pad * (d_in * x_bytes + d_out * o_bytes)
                        + (d_in * HIDDEN + HIDDEN * d_out) * w_bytes
                        + 3 * (HIDDEN + d_out) * 4),
    )

    kernel = functools.partial(_to_clip_mlp_kernel, ln1_bf16=bool(bf16_valu))

    out = pl.pallas_call(
        kernel,
        out_shape=jax.ShapeDtypeStruct((m_pad, d_out), out_dtype),
        grid_spec=pltpu.PrefetchScalarGridSpec(
            num_scalar_prefetch=0,
            grid=(grid_m,),
            in_specs=[
                pl.BlockSpec((tm, d_in), lambda i: (i, 0)),  # x tile (pipelined)
                _resident_spec((d_in, HIDDEN)),              # w1 (bf16, resident)
                _resident_spec((3, HIDDEN)),                 # [b1; gamma1; beta1]
                _resident_spec((HIDDEN, d_out)),             # w2 (bf16, resident)
                _resident_spec((3, d_out)),                  # [b2; gamma2; beta2]
            ],
            out_specs=pl.BlockSpec((tm, d_out), lambda i: (i, 0)),
        ),
        compiler_params=pltpu.CompilerParams(
            dimension_semantics=("parallel",),
            vmem_limit_bytes=vmem_limit,
        ),
        cost_estimate=cost,
    )(xm, w1, p1, w2, p2)

    if m_pad != M:
        out = out[:M]
    return out.reshape(*lead, d_out)


# ------------------------------- init / reference --------------------------------

def init_params(key, input_dim, output_dim):
    """Synthetic init matching the PyTorch module's parameter shapes.

    fc weights ~ U(-1/sqrt(fan_in), 1/sqrt(fan_in)); LayerNorm gamma=1, beta=0.
    Weights stored transposed vs. PyTorch: (in_dim, out_dim).
    """
    k1, k2, k3, k4 = jax.random.split(key, 4)
    lim1 = 1.0 / jnp.sqrt(input_dim)
    lim2 = 1.0 / jnp.sqrt(HIDDEN)
    w1 = jax.random.uniform(k1, (input_dim, HIDDEN), jnp.float32, -lim1, lim1)
    b1 = jax.random.uniform(k2, (HIDDEN,), jnp.float32, -lim1, lim1)
    w2 = jax.random.uniform(k3, (HIDDEN, output_dim), jnp.float32, -lim2, lim2)
    b2 = jax.random.uniform(k4, (output_dim,), jnp.float32, -lim2, lim2)
    g1 = jnp.ones((HIDDEN,), jnp.float32)
    be1 = jnp.zeros((HIDDEN,), jnp.float32)
    g2 = jnp.ones((output_dim,), jnp.float32)
    be2 = jnp.zeros((output_dim,), jnp.float32)
    return (w1, b1, g1, be1, w2, b2, g2, be2)


def _layernorm_ref(x, gamma, beta):
    mu = jnp.mean(x, axis=-1, keepdims=True)
    var = jnp.mean(jnp.square(x - mu), axis=-1, keepdims=True)
    return (x - mu) * lax.rsqrt(var + LN_EPS) * gamma + beta


def reference(x, params):
    """Pure-JAX (f32) reference of the PyTorch forward pass."""
    w1, b1, g1, be1, w2, b2, g2, be2 = params
    h = x @ w1 + b1
    h = jnp.maximum(_layernorm_ref(h, g1, be1), 0.0)
    y = h @ w2 + b2
    return _layernorm_ref(y, g2, be2)


if __name__ == "__main__":
    key = jax.random.PRNGKey(0)
    kx, kp, kx2 = jax.random.split(key, 3)

    batch, seq = 2, 8
    input_dim, output_dim = 32, 256

    x = jax.random.normal(kx, (batch, seq, input_dim), dtype=jnp.float32)
    params = init_params(kp, input_dim, output_dim)
    prepared = prepare_params(params)   # one-time bf16 cast + LN/bias packing

    out = jax.block_until_ready(to_clip_mlp(x, prepared))
    ref = reference(x, params)
    assert out.shape == (batch, seq, output_dim), out.shape
    # bf16 MXU inputs (and bf16 LN1 elementwise chain on v6e/v7x) with f32
    # accumulation; LayerNorm renormalizes most of the quantization error ->
    # expect O(1e-2) absolute on a unit-variance output.
    err = float(jnp.max(jnp.abs(out - ref)))
    assert err < 1e-1, err

    # Uneven row count exercises the pad-to-tile / slice-back path.
    x2 = jax.random.normal(kx2, (3, 5, input_dim), dtype=jnp.float32)
    out2 = jax.block_until_ready(to_clip_mlp(x2, prepared))
    ref2 = reference(x2, params)
    assert out2.shape == (3, 5, output_dim), out2.shape
    err2 = float(jnp.max(jnp.abs(out2 - ref2)))
    assert err2 < 1e-1, err2

    print("KERNEL_OK")
</pallas_src>

<mosaic_0001>
module attributes {stable_mosaic.version = 11 : i64} {
  func.func @_to_clip_mlp_kernel(%arg0: i32, %arg1: memref<16x32xf32, #tpu.memory_space<vmem>>, %arg2: memref<32x2048xbf16, #tpu.memory_space<vmem>>, %arg3: memref<3x2048xf32, #tpu.memory_space<vmem>>, %arg4: memref<2048x256xbf16, #tpu.memory_space<vmem>>, %arg5: memref<3x256xf32, #tpu.memory_space<vmem>>, %arg6: memref<16x256xf32, #tpu.memory_space<vmem>>) attributes {dimension_semantics = [#tpu.dimension_semantics<parallel>], iteration_bounds = array<i64: 1>, scalar_prefetch = 0 : i64, scratch_operands = 0 : i64, tpu.core_type = #tpu.core_type<tc>, window_params = [{transform_indices = @transform_0, window_bounds = array<i64: 16, 32>}, {pipeline_mode = #tpu.pipeline_mode<synchronous>, transform_indices = @transform_1, window_bounds = array<i64: 32, 2048>}, {pipeline_mode = #tpu.pipeline_mode<synchronous>, transform_indices = @transform_2, window_bounds = array<i64: 3, 2048>}, {pipeline_mode = #tpu.pipeline_mode<synchronous>, transform_indices = @transform_3, window_bounds = array<i64: 2048, 256>}, {pipeline_mode = #tpu.pipeline_mode<synchronous>, transform_indices = @transform_4, window_bounds = array<i64: 3, 256>}, {transform_indices = @transform_5, window_bounds = array<i64: 16, 256>}]} {
    %c0 = arith.constant 0 : index
    %c0_0 = arith.constant 0 : index
    %0 = vector.load %arg1[%c0, %c0_0] : memref<16x32xf32, #tpu.memory_space<vmem>>, vector<16x32xf32>
    %1 = arith.truncf %0 : vector<16x32xf32> to vector<16x32xbf16>
    %c0_1 = arith.constant 0 : index
    %c0_2 = arith.constant 0 : index
    %2 = vector.load %arg3[%c0_1, %c0_2] : memref<3x2048xf32, #tpu.memory_space<vmem>>, vector<3x2048xf32>
    %3 = vector.extract_strided_slice %2 {offsets = [0, 0], sizes = [1, 2048], strides = [1, 1]} : vector<3x2048xf32> to vector<1x2048xf32>
    %4 = vector.extract_strided_slice %2 {offsets = [1, 0], sizes = [1, 2048], strides = [1, 1]} : vector<3x2048xf32> to vector<1x2048xf32>
    %5 = vector.extract_strided_slice %2 {offsets = [2, 0], sizes = [1, 2048], strides = [1, 1]} : vector<3x2048xf32> to vector<1x2048xf32>
    %c0_3 = arith.constant 0 : index
    %c0_4 = arith.constant 0 : index
    %6 = vector.load %arg2[%c0_3, %c0_4] : memref<32x2048xbf16, #tpu.memory_space<vmem>>, vector<32x2048xbf16>
    %cst = arith.constant dense<0.000000e+00> : vector<16x2048xf32>
    %7 = tpu.matmul %1, %6, %cst {dimension_numbers = #tpu.dot_dimension_numbers<[1], [0], [0], [1], [0, 0, 1, 1], [], []>} : vector<16x32xbf16>, vector<32x2048xbf16>, vector<16x2048xf32> -> vector<16x2048xf32>
    %8 = vector.broadcast %3 : vector<1x2048xf32> to vector<16x2048xf32>
    %9 = arith.addf %7, %8 : vector<16x2048xf32>
    %cst_5 = arith.constant dense<0.000000e+00> : vector<16xf32>
    %10 = vector.multi_reduction <add>, %9, %cst_5 [1] : vector<16x2048xf32> to vector<16xf32>
    %11 = vector.shape_cast %10 : vector<16xf32> to vector<16x1xf32>
    %cst_6 = arith.constant 4.8828125E-4 : f32
    %12 = vector.broadcast %cst_6 : f32 to vector<16x1xf32>
    %13 = arith.mulf %11, %12 : vector<16x1xf32>
    %14 = arith.mulf %9, %9 : vector<16x2048xf32>
    %cst_7 = arith.constant dense<0.000000e+00> : vector<16xf32>
    %15 = vector.multi_reduction <add>, %14, %cst_7 [1] : vector<16x2048xf32> to vector<16xf32>
    %16 = vector.shape_cast %15 : vector<16xf32> to vector<16x1xf32>
    %cst_8 = arith.constant 4.8828125E-4 : f32
    %17 = vector.broadcast %cst_8 : f32 to vector<16x1xf32>
    %18 = arith.mulf %16, %17 : vector<16x1xf32>
    %19 = arith.mulf %13, %13 : vector<16x1xf32>
    %20 = arith.subf %18, %19 : vector<16x1xf32>
    %cst_9 = arith.constant 0.000000e+00 : f32
    %21 = vector.broadcast %cst_9 : f32 to vector<16x1xf32>
    %22 = arith.maximumf %20, %21 : vector<16x1xf32>
    %cst_10 = arith.constant 9.99999974E-6 : f32
    %23 = vector.broadcast %cst_10 : f32 to vector<16x1xf32>
    %24 = arith.addf %22, %23 : vector<16x1xf32>
    %25 = math.rsqrt %24 : vector<16x1xf32>
    %26 = vector.broadcast %13 : vector<16x1xf32> to vector<16x2048xf32>
    %27 = arith.subf %9, %26 : vector<16x2048xf32>
    %28 = arith.truncf %27 : vector<16x2048xf32> to vector<16x2048xbf16>
    %29 = arith.truncf %25 : vector<16x1xf32> to vector<16x1xbf16>
    %30 = vector.broadcast %29 : vector<16x1xbf16> to vector<16x2048xbf16>
    %31 = arith.mulf %28, %30 : vector<16x2048xbf16>
    %32 = arith.truncf %4 : vector<1x2048xf32> to vector<1x2048xbf16>
    %33 = vector.broadcast %32 : vector<1x2048xbf16> to vector<16x2048xbf16>
    %34 = arith.mulf %31, %33 : vector<16x2048xbf16>
    %35 = arith.truncf %5 : vector<1x2048xf32> to vector<1x2048xbf16>
    %36 = vector.broadcast %35 : vector<1x2048xbf16> to vector<16x2048xbf16>
    %37 = arith.addf %34, %36 : vector<16x2048xbf16>
    %cst_11 = arith.constant 0.000000e+00 : bf16
    %38 = vector.broadcast %cst_11 : bf16 to vector<16x2048xbf16>
    %39 = arith.maximumf %37, %38 : vector<16x2048xbf16>
    %c0_12 = arith.constant 0 : index
    %c0_13 = arith.constant 0 : index
    %40 = vector.load %arg5[%c0_12, %c0_13] : memref<3x256xf32, #tpu.memory_space<vmem>>, vector<3x256xf32>
    %41 = vector.extract_strided_slice %40 {offsets = [0, 0], sizes = [1, 256], strides = [1, 1]} : vector<3x256xf32> to vector<1x256xf32>
    %42 = vector.extract_strided_slice %40 {offsets = [1, 0], sizes = [1, 256], strides = [1, 1]} : vector<3x256xf32> to vector<1x256xf32>
    %43 = vector.extract_strided_slice %40 {offsets = [2, 0], sizes = [1, 256], strides = [1, 1]} : vector<3x256xf32> to vector<1x256xf32>
    %c0_14 = arith.constant 0 : index
    %c0_15 = arith.constant 0 : index
    %44 = vector.load %arg4[%c0_14, %c0_15] : memref<2048x256xbf16, #tpu.memory_space<vmem>>, vector<2048x256xbf16>
    %cst_16 = arith.constant dense<0.000000e+00> : vector<16x256xf32>
    %45 = tpu.matmul %39, %44, %cst_16 {dimension_numbers = #tpu.dot_dimension_numbers<[1], [0], [0], [1], [0, 0, 1, 1], [], []>} : vector<16x2048xbf16>, vector<2048x256xbf16>, vector<16x256xf32> -> vector<16x256xf32>
    %46 = vector.broadcast %41 : vector<1x256xf32> to vector<16x256xf32>
    %47 = arith.addf %45, %46 : vector<16x256xf32>
    %cst_17 = arith.constant dense<0.000000e+00> : vector<16xf32>
    %48 = vector.multi_reduction <add>, %47, %cst_17 [1] : vector<16x256xf32> to vector<16xf32>
    %49 = vector.shape_cast %48 : vector<16xf32> to vector<16x1xf32>
    %cst_18 = arith.constant 3.906250e-03 : f32
    %50 = vector.broadcast %cst_18 : f32 to vector<16x1xf32>
    %51 = arith.mulf %49, %50 : vector<16x1xf32>
    %52 = arith.mulf %47, %47 : vector<16x256xf32>
    %cst_19 = arith.constant dense<0.000000e+00> : vector<16xf32>
    %53 = vector.multi_reduction <add>, %52, %cst_19 [1] : vector<16x256xf32> to vector<16xf32>
    %54 = vector.shape_cast %53 : vector<16xf32> to vector<16x1xf32>
    %cst_20 = arith.constant 3.906250e-03 : f32
    %55 = vector.broadcast %cst_20 : f32 to vector<16x1xf32>
    %56 = arith.mulf %54, %55 : vector<16x1xf32>
    %57 = arith.mulf %51, %51 : vector<16x1xf32>
    %58 = arith.subf %56, %57 : vector<16x1xf32>
    %cst_21 = arith.constant 0.000000e+00 : f32
    %59 = vector.broadcast %cst_21 : f32 to vector<16x1xf32>
    %60 = arith.maximumf %58, %59 : vector<16x1xf32>
    %cst_22 = arith.constant 9.99999974E-6 : f32
    %61 = vector.broadcast %cst_22 : f32 to vector<16x1xf32>
    %62 = arith.addf %60, %61 : vector<16x1xf32>
    %63 = math.rsqrt %62 : vector<16x1xf32>
    %64 = vector.broadcast %51 : vector<16x1xf32> to vector<16x256xf32>
    %65 = arith.subf %47, %64 : vector<16x256xf32>
    %66 = vector.broadcast %63 : vector<16x1xf32> to vector<16x256xf32>
    %67 = arith.mulf %65, %66 : vector<16x256xf32>
    %68 = vector.broadcast %42 : vector<1x256xf32> to vector<16x256xf32>
    %69 = arith.mulf %67, %68 : vector<16x256xf32>
    %70 = vector.broadcast %43 : vector<1x256xf32> to vector<16x256xf32>
    %71 = arith.addf %69, %70 : vector<16x256xf32>
    %c0_23 = arith.constant 0 : index
    %c0_24 = arith.constant 0 : index
    %72 = vector.load %arg6[%c0_23, %c0_24] : memref<16x256xf32, #tpu.memory_space<vmem>>, vector<16x256xf32>
    tpu.vector_store %arg6[%c0_23, %c0_24], %71 {strides = array<i32>} : memref<16x256xf32, #tpu.memory_space<vmem>>, vector<16x256xf32>,
    return
  }
  func.func @transform_0(%arg0: i32) -> (i32, i32) {
    %c0_i32 = arith.constant 0 : i32
    %c0_i32_0 = arith.constant 0 : i32
    return %arg0, %c0_i32 : i32, i32
  }
  func.func @transform_1(%arg0: i32) -> (i32, i32) {
    %c0_i32 = arith.constant 0 : i32
    %c0_i32_0 = arith.constant 0 : i32
    %c0_i32_1 = arith.constant 0 : i32
    return %c0_i32, %c0_i32_0 : i32, i32
  }
  func.func @transform_2(%arg0: i32) -> (i32, i32) {
    %c0_i32 = arith.constant 0 : i32
    %c0_i32_0 = arith.constant 0 : i32
    %c0_i32_1 = arith.constant 0 : i32
    return %c0_i32, %c0_i32_0 : i32, i32
  }
  func.func @transform_3(%arg0: i32) -> (i32, i32) {
    %c0_i32 = arith.constant 0 : i32
    %c0_i32_0 = arith.constant 0 : i32
    %c0_i32_1 = arith.constant 0 : i32
    return %c0_i32, %c0_i32_0 : i32, i32
  }
  func.func @transform_4(%arg0: i32) -> (i32, i32) {
    %c0_i32 = arith.constant 0 : i32
    %c0_i32_0 = arith.constant 0 : i32
    %c0_i32_1 = arith.constant 0 : i32
    return %c0_i32, %c0_i32_0 : i32, i32
  }
  func.func @transform_5(%arg0: i32) -> (i32, i32) {
    %c0_i32 = arith.constant 0 : i32
    %c0_i32_0 = arith.constant 0 : i32
    return %arg0, %c0_i32 : i32, i32
  }
}

</mosaic_0001>

<llo_original>
// kernel: to_clip_mlp.1
$region0: #{to_clip_mlp.1}
  #allocation0 [shape = 'u32[]', space=smem, size = 0x4, offset = 0x4, fixed_abs, tag = 'smem constant byte address 0x4 - core index']
  #allocation1 [shape = 'u32[144,128]{1,0:T(1,128)}', space=vmem, size = 0x12000, scoped, tag = 'internal scratch']
  %s0 = inlined_call_operand.hbm [shape: f32[16,32], index: 0, kind: input, shape index: {}]
  %s1 = inlined_call_operand.hbm [shape: bf16[32,2048], index: 1, kind: input, shape index: {}]
  %s2 = inlined_call_operand.hbm [shape: f32[3,2048], index: 2, kind: input, shape index: {}]
  %s3 = inlined_call_operand.hbm [shape: bf16[2048,256], index: 3, kind: input, shape index: {}]
  %s4 = inlined_call_operand.vmem [shape: f32[3,256], index: 4, kind: input, shape index: {}]
  %s5 = inlined_call_operand.hbm [shape: f32[16,256], index: 5, kind: output, shape index: {}]
  %s6 = sld [smem:[#allocation0]]
  $region46: #{to_clip_mlp.1} parent=0
    _
  %s8 = ssub.s32 1, %s6
  %s9 = scalar_select 0, %s8, %s6
  $region1: #{to_clip_mlp.1} parent=0
    #allocation2 [shape = 'u8[8192]{0}', space=vmem, size = 0x2000, scoped, tag = 'input window, operand 0, single buffered']
    #allocation3 [shape = 's32[1]{0}', space=sflag, size = 0x4, scoped, tag = 'scoped memory for to_clip_mlp.1']
    #allocation4 [shape = 's32[1]{0}', space=sflag, size = 0x4, scoped, tag = 'scoped memory for to_clip_mlp.1']
    #allocation5 [shape = 'u8[131072]{0}', space=vmem, size = 0x20000, scoped, tag = 'input window, operand 1, single buffered']
    #allocation6 [shape = 's32[1]{0}', space=sflag, size = 0x4, scoped, tag = 'scoped memory for to_clip_mlp.1']
    #allocation7 [shape = 'u8[32768]{0}', space=vmem, size = 0x8000, scoped, tag = 'input window, operand 2, single buffered']
    #allocation8 [shape = 'u8[1048576]{0}', space=vmem, size = 0x100000, scoped, tag = 'input window, operand 3, single buffered']
    #allocation9 [shape = 's32[1]{0}', space=sflag, size = 0x4, scoped, tag = 'scoped memory for to_clip_mlp.1']
    #allocation10 [shape = 'u8[16384]{0}', space=vmem, size = 0x4000, scoped, tag = 'output window, operand 0, single buffered']
    %10 = vsyncpa [#allocation3], 0
    %11 = vsyncpa [#allocation6], 0
    %12 = vsyncpa [#allocation9], 0
    %13 = vsyncpa [#allocation4], 0
    // Predicated region
    $region2: #{to_clip_mlp.1} parent=1 // pred_check
      _
    $region3: #{to_clip_mlp.1} parent=1 // pred_check_branch
      %15 = sbr.rel (0) target = $region5
    $region4: #{to_clip_mlp.1} parent=1 // pred_region
      %s17 = ssub.s32 256, 256
      %18 = vsyncadd [#allocation3], %s17
      %s19 = sshll.u32 [#allocation2], 4
      %s20 = int_to_ptr.vmem [resolvable:$true] %s19
      %25 = dma.hbm_to_vmem [thread:$0]  %s0, 256, %s20, [#allocation3], 128, 128, 8
    $region5: #{to_clip_mlp.1} parent=1 // pred_fallthru
      _
    // Predicated region
    $region6: #{to_clip_mlp.1} parent=1 // pred_check
      _
    $region7: #{to_clip_mlp.1} parent=1 // pred_check_branch
      %27 = sbr.rel (0) target = $region9
    $region8: #{to_clip_mlp.1} parent=1 // pred_region
      %s29 = ssub.s32 4096, 4096
      %30 = vsyncadd [#allocation6], %s29
      %s31 = sshll.u32 [#allocation5], 4
      %s32 = int_to_ptr.vmem [resolvable:$true] %s31
      %37 = dma.hbm_to_vmem [thread:$0]  %s1, 4096, %s32, [#allocation6], 1024, 1024, 64
    $region9: #{to_clip_mlp.1} parent=1 // pred_fallthru
      _
    // Predicated region
    $region10: #{to_clip_mlp.1} parent=1 // pred_check
      _
    $region11: #{to_clip_mlp.1} parent=1 // pred_check_branch
      %39 = sbr.rel (0) target = $region13
    $region12: #{to_clip_mlp.1} parent=1 // pred_region
      %s41 = ssub.s32 1024, 1024
      %42 = vsyncadd [#allocation6], %s41
      %s44 = sshll.u32 [#allocation7], 4
      %s45 = int_to_ptr.vmem [resolvable:$true] %s44
      %47 = dma.hbm_to_vmem [thread:$0]  %s2, 1024, %s45, [#allocation6]
    $region13: #{to_clip_mlp.1} parent=1 // pred_fallthru
      _
    // Predicated region
    $region14: #{to_clip_mlp.1} parent=1 // pred_check
      _
    $region15: #{to_clip_mlp.1} parent=1 // pred_check_branch
      %49 = sbr.rel (0) target = $region17
    $region16: #{to_clip_mlp.1} parent=1 // pred_region
      %s51 = ssub.s32 32768, 32768
      %52 = vsyncadd [#allocation9], %s51
      %s53 = sshll.u32 [#allocation8], 4
      %s54 = int_to_ptr.vmem [resolvable:$true] %s53
      %59 = dma.hbm_to_vmem [thread:$0]  %s3, 32768, %s54, [#allocation9], 128, 128, 8
    $region17: #{to_clip_mlp.1} parent=1 // pred_fallthru
      _
    // Predicated region
    $region18: #{to_clip_mlp.1} parent=1 // pred_check
      _
    $region19: #{to_clip_mlp.1} parent=1 // pred_check_branch
      %61 = sbr.rel (0) target = $region21
    $region20: #{to_clip_mlp.1} parent=1 // pred_region
      _
    $region21: #{to_clip_mlp.1} parent=1 // pred_fallthru
      _
    // Predicated region
    $region22: #{to_clip_mlp.1} parent=1 // pred_check
      _
    $region23: #{to_clip_mlp.1} parent=1 // pred_check_branch
      %63 = sbr.rel (0) target = $region25
    $region24: #{to_clip_mlp.1} parent=1 // pred_region
      %64 = dma.done [#allocation3], 256
    $region25: #{to_clip_mlp.1} parent=1 // pred_fallthru
      _
    // Predicated region
    $region26: #{to_clip_mlp.1} parent=1 // pred_check
      _
    $region27: #{to_clip_mlp.1} parent=1 // pred_check_branch
      %66 = sbr.rel (0) target = $region29
    $region28: #{to_clip_mlp.1} parent=1 // pred_region
      %67 = dma.done [#allocation6], 4096
    $region29: #{to_clip_mlp.1} parent=1 // pred_fallthru
      _
    // Predicated region
    $region30: #{to_clip_mlp.1} parent=1 // pred_check
      _
    $region31: #{to_clip_mlp.1} parent=1 // pred_check_branch
      %69 = sbr.rel (0) target = $region33
    $region32: #{to_clip_mlp.1} parent=1 // pred_region
      %70 = dma.done [#allocation6], 1024
    $region33: #{to_clip_mlp.1} parent=1 // pred_fallthru
      _
    // Predicated region
    $region34: #{to_clip_mlp.1} parent=1 // pred_check
      _
    $region35: #{to_clip_mlp.1} parent=1 // pred_check_branch
      %72 = sbr.rel (0) target = $region37
    $region36: #{to_clip_mlp.1} parent=1 // pred_region
      %73 = dma.done [#allocation9], 32768
    $region37: #{to_clip_mlp.1} parent=1 // pred_fallthru
      _
    %v75 = vld [vmem:[#allocation2] sm:$0xff]
    %v76 = vld [vmem:[#allocation2 + $0x8] sm:$0xff]
    %v77 = vpack.c.bf16 %v76, %v75
    %v78 = vld [vmem:[#allocation7] sm:$0x77]
    %v79 = vld [vmem:[#allocation7 + $0x8] sm:$0x77]
    %v80 = vld [vmem:[#allocation7 + $0x10] sm:$0x77]
    %v81 = vld [vmem:[#allocation7 + $0x18] sm:$0x77]
    %v82 = vld [vmem:[#allocation7 + $0x20] sm:$0x77]
    %v83 = vld [vmem:[#allocation7 + $0x28] sm:$0x77]
    %v84 = vld [vmem:[#allocation7 + $0x30] sm:$0x77]
    %v85 = vld [vmem:[#allocation7 + $0x38] sm:$0x77]
    %v86 = vld [vmem:[#allocation5] sm:$0xff]
    %v87 = vld [vmem:[#allocation5 + $0x8] sm:$0xff]
    %v88 = vld [vmem:[#allocation5 + $0x10] sm:$0xff]
    %v89 = vld [vmem:[#allocation5 + $0x18] sm:$0xff]
    %v90 = vld [vmem:[#allocation5 + $0x20] sm:$0xff]
    %v91 = vld [vmem:[#allocation5 + $0x28] sm:$0xff]
    %v92 = vld [vmem:[#allocation5 + $0x30] sm:$0xff]
    %v93 = vld [vmem:[#allocation5 + $0x38] sm:$0xff]
    %v94 = vld [vmem:[#allocation5 + $0x40] sm:$0xff]
    %v95 = vld [vmem:[#allocation5 + $0x48] sm:$0xff]
    %v96 = vld [vmem:[#allocation5 + $0x50] sm:$0xff]
    %v97 = vld [vmem:[#allocation5 + $0x58] sm:$0xff]
    %v98 = vld [vmem:[#allocation5 + $0x60] sm:$0xff]
    %v99 = vld [vmem:[#allocation5 + $0x68] sm:$0xff]
    %v100 = vld [vmem:[#allocation5 + $0x70] sm:$0xff]
    %v101 = vld [vmem:[#allocation5 + $0x78] sm:$0xff]
    %v102 = vld [vmem:[#allocation5 + $0x80] sm:$0xff]
    %v103 = vld [vmem:[#allocation5 + $0x88] sm:$0xff]
    %v104 = vld [vmem:[#allocation5 + $0x90] sm:$0xff]
    %v105 = vld [vmem:[#allocation5 + $0x98] sm:$0xff]
    %v106 = vld [vmem:[#allocation5 + $0xa0] sm:$0xff]
    %v107 = vld [vmem:[#allocation5 + $0xa8] sm:$0xff]
    %v108 = vld [vmem:[#allocation5 + $0xb0] sm:$0xff]
    %v109 = vld [vmem:[#allocation5 + $0xb8] sm:$0xff]
    %v110 = vld [vmem:[#allocation5 + $0xc0] sm:$0xff]
    %v111 = vld [vmem:[#allocation5 + $0xc8] sm:$0xff]
    %v112 = vld [vmem:[#allocation5 + $0xd0] sm:$0xff]
    %v113 = vld [vmem:[#allocation5 + $0xd8] sm:$0xff]
    %v114 = vld [vmem:[#allocation5 + $0xe0] sm:$0xff]
    %v115 = vld [vmem:[#allocation5 + $0xe8] sm:$0xff]
    %v116 = vld [vmem:[#allocation5 + $0xf0] sm:$0xff]
    %v117 = vld [vmem:[#allocation5 + $0xf8] sm:$0xff]
    %v126 = vlaneseq
    %v127 = vshrl.u32 %v126, 7
    %v128 = vsub.s32 0, %v127
    %v129 = vrot.slane %v78, %v128
    %v130 = vlaneseq
    %v131 = vshrl.u32 %v130, 7
    %v132 = vsub.s32 4, %v131
    %v133 = vrot.slane %v78, %v132
    %v134 = vlaneseq
    %v135 = vshrl.u32 %v134, 7
    %v136 = vsub.s32 0, %v135
    %v137 = vrot.slane %v79, %v136
    %v138 = vlaneseq
    %v139 = vshrl.u32 %v138, 7
    %v140 = vsub.s32 4, %v139
    %v141 = vrot.slane %v79, %v140
    %v142 = vlaneseq
    %v143 = vshrl.u32 %v142, 7
    %v144 = vsub.s32 0, %v143
    %v145 = vrot.slane %v80, %v144
    %v146 = vlaneseq
    %v147 = vshrl.u32 %v146, 7
    %v148 = vsub.s32 4, %v147
    %v149 = vrot.slane %v80, %v148
    %v150 = vlaneseq
    %v151 = vshrl.u32 %v150, 7
    %v152 = vsub.s32 0, %v151
    %v153 = vrot.slane %v81, %v152
    %v154 = vlaneseq
    %v155 = vshrl.u32 %v154, 7
    %v156 = vsub.s32 4, %v155
    %v157 = vrot.slane %v81, %v156
    %v158 = vlaneseq
    %v159 = vshrl.u32 %v158, 7
    %v160 = vsub.s32 0, %v159
    %v161 = vrot.slane %v82, %v160
    %v162 = vlaneseq
    %v163 = vshrl.u32 %v162, 7
    %v164 = vsub.s32 4, %v163
    %v165 = vrot.slane %v82, %v164
    %v166 = vlaneseq
    %v167 = vshrl.u32 %v166, 7
    %v168 = vsub.s32 0, %v167
    %v169 = vrot.slane %v83, %v168
    %v170 = vlaneseq
    %v171 = vshrl.u32 %v170, 7
    %v172 = vsub.s32 4, %v171
    %v173 = vrot.slane %v83, %v172
    %v174 = vlaneseq
    %v175 = vshrl.u32 %v174, 7
    %v176 = vsub.s32 0, %v175
    %v177 = vrot.slane %v84, %v176
    %v178 = vlaneseq
    %v179 = vshrl.u32 %v178, 7
    %v180 = vsub.s32 4, %v179
    %v181 = vrot.slane %v84, %v180
    %v182 = vlaneseq
    %v183 = vshrl.u32 %v182, 7
    %v184 = vsub.s32 0, %v183
    %v185 = vrot.slane %v85, %v184
    %v186 = vlaneseq
    %v187 = vshrl.u32 %v186, 7
    %v188 = vsub.s32 4, %v187
    %v189 = vrot.slane %v85, %v188
    %v206 = vlaneseq
    %v207 = vshrl.u32 %v206, 7
    %v208 = vsub.s32 0, %v207
    %v209 = vrot.slane %v129, %v208
    %v210 = vlaneseq
    %v211 = vshrl.u32 %v210, 7
    %v212 = vsub.s32 0, %v211
    %v213 = vrot.slane %v133, %v212
    %v214 = vlaneseq
    %v215 = vshrl.u32 %v214, 7
    %v216 = vsub.s32 0, %v215
    %v217 = vrot.slane %v137, %v216
    %v218 = vlaneseq
    %v219 = vshrl.u32 %v218, 7
    %v220 = vsub.s32 0, %v219
    %v221 = vrot.slane %v141, %v220
    %v222 = vlaneseq
    %v223 = vshrl.u32 %v222, 7
    %v224 = vsub.s32 0, %v223
    %v225 = vrot.slane %v145, %v224
    %v226 = vlaneseq
    %v227 = vshrl.u32 %v226, 7
    %v228 = vsub.s32 0, %v227
    %v229 = vrot.slane %v149, %v228
    %v230 = vlaneseq
    %v231 = vshrl.u32 %v230, 7
    %v232 = vsub.s32 0, %v231
    %v233 = vrot.slane %v153, %v232
    %v234 = vlaneseq
    %v235 = vshrl.u32 %v234, 7
    %v236 = vsub.s32 0, %v235
    %v237 = vrot.slane %v157, %v236
    %v238 = vlaneseq
    %v239 = vshrl.u32 %v238, 7
    %v240 = vsub.s32 0, %v239
    %v241 = vrot.slane %v161, %v240
    %v242 = vlaneseq
    %v243 = vshrl.u32 %v242, 7
    %v244 = vsub.s32 0, %v243
    %v245 = vrot.slane %v165, %v244
    %v246 = vlaneseq
    %v247 = vshrl.u32 %v246, 7
    %v248 = vsub.s32 0, %v247
    %v249 = vrot.slane %v169, %v248
    %v250 = vlaneseq
    %v251 = vshrl.u32 %v250, 7
    %v252 = vsub.s32 0, %v251
    %v253 = vrot.slane %v173, %v252
    %v254 = vlaneseq
    %v255 = vshrl.u32 %v254, 7
    %v256 = vsub.s32 0, %v255
    %v257 = vrot.slane %v177, %v256
    %v258 = vlaneseq
    %v259 = vshrl.u32 %v258, 7
    %v260 = vsub.s32 0, %v259
    %v261 = vrot.slane %v181, %v260
    %v262 = vlaneseq
    %v263 = vshrl.u32 %v262, 7
    %v264 = vsub.s32 0, %v263
    %v265 = vrot.slane %v185, %v264
    %v266 = vlaneseq
    %v267 = vshrl.u32 %v266, 7
    %v268 = vsub.s32 0, %v267
    %v269 = vrot.slane %v189, %v268
    %v302 = vunpack.c.l.b16 %v86
    %v303 = vunpack.c.h.b16 %v86
    %v304 = vunpack.c.l.b16 %v87
    %v305 = vunpack.c.h.b16 %v87
    %v306 = vunpack.c.l.b16 %v88
    %v307 = vunpack.c.h.b16 %v88
    %v308 = vunpack.c.l.b16 %v89
    %v309 = vunpack.c.h.b16 %v89
    %v310 = vunpack.c.l.b16 %v90
    %v311 = vunpack.c.h.b16 %v90
    %v312 = vunpack.c.l.b16 %v91
    %v313 = vunpack.c.h.b16 %v91
    %v314 = vunpack.c.l.b16 %v92
    %v315 = vunpack.c.h.b16 %v92
    %v316 = vunpack.c.l.b16 %v93
    %v317 = vunpack.c.h.b16 %v93
    %v318 = vunpack.c.l.b16 %v94
    %v319 = vunpack.c.h.b16 %v94
    %v320 = vunpack.c.l.b16 %v95
    %v321 = vunpack.c.h.b16 %v95
    %v322 = vunpack.c.l.b16 %v96
    %v323 = vunpack.c.h.b16 %v96
    %v324 = vunpack.c.l.b16 %v97
    %v325 = vunpack.c.h.b16 %v97
    %v326 = vunpack.c.l.b16 %v98
    %v327 = vunpack.c.h.b16 %v98
    %v328 = vunpack.c.l.b16 %v99
    %v329 = vunpack.c.h.b16 %v99
    %v330 = vunpack.c.l.b16 %v100
    %v331 = vunpack.c.h.b16 %v100
    %v332 = vunpack.c.l.b16 %v101
    %v333 = vunpack.c.h.b16 %v101
    %v334 = vunpack.c.l.b16 %v102
    %v335 = vunpack.c.h.b16 %v102
    %v336 = vunpack.c.l.b16 %v103
    %v337 = vunpack.c.h.b16 %v103
    %v338 = vunpack.c.l.b16 %v104
    %v339 = vunpack.c.h.b16 %v104
    %v340 = vunpack.c.l.b16 %v105
    %v341 = vunpack.c.h.b16 %v105
    %v342 = vunpack.c.l.b16 %v106
    %v343 = vunpack.c.h.b16 %v106
    %v344 = vunpack.c.l.b16 %v107
    %v345 = vunpack.c.h.b16 %v107
    %v346 = vunpack.c.l.b16 %v108
    %v347 = vunpack.c.h.b16 %v108
    %v348 = vunpack.c.l.b16 %v109
    %v349 = vunpack.c.h.b16 %v109
    %v350 = vunpack.c.l.b16 %v110
    %v351 = vunpack.c.h.b16 %v110
    %v352 = vunpack.c.l.b16 %v111
    %v353 = vunpack.c.h.b16 %v111
    %v354 = vunpack.c.l.b16 %v112
    %v355 = vunpack.c.h.b16 %v112
    %v356 = vunpack.c.l.b16 %v113
    %v357 = vunpack.c.h.b16 %v113
    %v358 = vunpack.c.l.b16 %v114
    %v359 = vunpack.c.h.b16 %v114
    %v360 = vunpack.c.l.b16 %v115
    %v361 = vunpack.c.h.b16 %v115
    %v362 = vunpack.c.l.b16 %v116
    %v363 = vunpack.c.h.b16 %v116
    %v364 = vunpack.c.l.b16 %v117
    %v365 = vunpack.c.h.b16 %v117
    %v366 = vpack.c.b16 %v318, %v302
    %v367 = vpack.c.b16 %v319, %v303
    %v368 = vpack.c.b16 %v320, %v304
    %v369 = vpack.c.b16 %v321, %v305
    %v370 = vpack.c.b16 %v322, %v306
    %v371 = vpack.c.b16 %v323, %v307
    %v372 = vpack.c.b16 %v324, %v308
    %v373 = vpack.c.b16 %v325, %v309
    %v374 = vpack.c.b16 %v326, %v310
    %v375 = vpack.c.b16 %v327, %v311
    %v376 = vpack.c.b16 %v328, %v312
    %v377 = vpack.c.b16 %v329, %v313
    %v378 = vpack.c.b16 %v330, %v314
    %v379 = vpack.c.b16 %v331, %v315
    %v380 = vpack.c.b16 %v332, %v316
    %v381 = vpack.c.b16 %v333, %v317
    %v382 = vpack.c.b16 %v350, %v334
    %v383 = vpack.c.b16 %v351, %v335
    %v384 = vpack.c.b16 %v352, %v336
    %v385 = vpack.c.b16 %v353, %v337
    %v386 = vpack.c.b16 %v354, %v338
    %v387 = vpack.c.b16 %v355, %v339
    %v388 = vpack.c.b16 %v356, %v340
    %v389 = vpack.c.b16 %v357, %v341
    %v390 = vpack.c.b16 %v358, %v342
    %v391 = vpack.c.b16 %v359, %v343
    %v392 = vpack.c.b16 %v360, %v344
    %v393 = vpack.c.b16 %v361, %v345
    %v394 = vpack.c.b16 %v362, %v346
    %v395 = vpack.c.b16 %v363, %v347
    %v396 = vpack.c.b16 %v364, %v348
    %v397 = vpack.c.b16 %v365, %v349
    %vm430 = vcmask 261120
    %v432 = vsel %vm430, %v77, 0
    %434 = vmatprep.subr.bf16.mxu0 %v367
    %435 = vmatpush1.bf16.msra.mxu0 %v366
    %436 = vmatprep.subr.bf16.mxu0 %v383
    %437 = vmatpush1.bf16.msra.mxu0 %v382
    %438 = vmatprep.subr.bf16.mxu0 0
    %439 = vmatpush1.bf16.msra.mxu0 0
    %440 = vmatprep.subr.bf16.mxu0 0
    %441 = vmatpush1.bf16.msra.mxu0 0
    %442 = vmatprep.subr.bf16.mxu0 0
    %443 = vmatpush1.bf16.msra.mxu0 0
    %444 = vmatprep.subr.bf16.mxu0 0
    %445 = vmatpush1.bf16.msra.mxu0 0
    %446 = vmatprep.subr.bf16.mxu0 0
    %447 = vmatpush1.bf16.msra.mxu0 0
    %448 = vmatprep.subr.bf16.mxu0 0
    %449 = vmatpush1.bf16.msra.mxu0 0
    %450 = vmatprep.subr.bf16.mxu0 0
    %451 = vmatpush1.bf16.msra.mxu0 0
    %452 = vmatprep.subr.bf16.mxu0 0
    %453 = vmatpush1.bf16.msra.mxu0 0
    %454 = vmatprep.subr.bf16.mxu0 0
    %455 = vmatpush1.bf16.msra.mxu0 0
    %456 = vmatprep.subr.bf16.mxu0 0
    %457 = vmatpush1.bf16.msra.mxu0 0
    %458 = vmatprep.subr.bf16.mxu0 0
    %459 = vmatpush1.bf16.msra.mxu0 0
    %460 = vmatprep.subr.bf16.mxu0 0
    %461 = vmatpush1.bf16.msra.mxu0 0
    %462 = vmatprep.subr.bf16.mxu0 0
    %463 = vmatpush1.bf16.msra.mxu0 0
    %464 = vmatprep.subr.bf16.mxu0 0
    %465 = vmatpush1.bf16.msra.mxu0 0
    %466 = vmatprep.mubr.bf16.mxu0 0
    %467 = vmatmul.mubr.bf16.gmra.mrb[0].mxu0 %v432
    %v468 = vpop.f32.mrb[0].mxu0
    %v469 = vadd.f32 %v209, %v468
    %v470 = vpop.f32.mrb[0].mxu0
    %v471 = vadd.f32 %v213, %v470
    %v472 = vpop.f32.mrb[0].mxu0
    %v473 = vadd.f32 %v209, %v472
    %v474 = vpop.f32.mrb[0].mxu0
    %v475 = vadd.f32 %v213, %v474
    %476 = vdwg.mxu0
    %477 = vmatprep.subr.bf16.mxu0 %v369
    %478 = vmatpush1.bf16.msra.mxu0 %v368
    %479 = vmatprep.subr.bf16.mxu0 %v385
    %480 = vmatpush1.bf16.msra.mxu0 %v384
    %481 = vmatprep.subr.bf16.mxu0 0
    %482 = vmatpush1.bf16.msra.mxu0 0
    %483 = vmatprep.subr.bf16.mxu0 0
    %484 = vmatpush1.bf16.msra.mxu0 0
    %485 = vmatprep.subr.bf16.mxu0 0
    %486 = vmatpush1.bf16.msra.mxu0 0
    %487 = vmatprep.subr.bf16.mxu0 0
    %488 = vmatpush1.bf16.msra.mxu0 0
    %489 = vmatprep.subr.bf16.mxu0 0
    %490 = vmatpush1.bf16.msra.mxu0 0
    %491 = vmatprep.subr.bf16.mxu0 0
    %492 = vmatpush1.bf16.msra.mxu0 0
    %493 = vmatprep.subr.bf16.mxu0 0
    %494 = vmatpush1.bf16.msra.mxu0 0
    %495 = vmatprep.subr.bf16.mxu0 0
    %496 = vmatpush1.bf16.msra.mxu0 0
    %497 = vmatprep.subr.bf16.mxu0 0
    %498 = vmatpush1.bf16.msra.mxu0 0
    %499 = vmatprep.subr.bf16.mxu0 0
    %500 = vmatpush1.bf16.msra.mxu0 0
    %501 = vmatprep.subr.bf16.mxu0 0
    %502 = vmatpush1.bf16.msra.mxu0 0
    %503 = vmatprep.subr.bf16.mxu0 0
    %504 = vmatpush1.bf16.msra.mxu0 0
    %505 = vmatprep.subr.bf16.mxu0 0
    %506 = vmatpush1.bf16.msra.mxu0 0
    %507 = vmatprep.subr.bf16.mxu0 0
    %508 = vmatpush1.bf16.msra.mxu0 0
    %509 = vmatprep.mubr.bf16.mxu0 0
    %510 = vmatmul.mubr.bf16.gmra.mrb[0].mxu0 %v432
    %v511 = vpop.f32.mrb[0].mxu0
    %v512 = vadd.f32 %v217, %v511
    %v513 = vpop.f32.mrb[0].mxu0
    %v514 = vadd.f32 %v221, %v513
    %v515 = vpop.f32.mrb[0].mxu0
    %v516 = vadd.f32 %v217, %v515
    %v517 = vpop.f32.mrb[0].mxu0
    %v518 = vadd.f32 %v221, %v517
    %519 = vdwg.mxu0
    %520 = vmatprep.subr.bf16.mxu0 %v371
    %521 = vmatpush1.bf16.msra.mxu0 %v370
    %522 = vmatprep.subr.bf16.mxu0 %v387
    %523 = vmatpush1.bf16.msra.mxu0 %v386
    %524 = vmatprep.subr.bf16.mxu0 0
    %525 = vmatpush1.bf16.msra.mxu0 0
    %526 = vmatprep.subr.bf16.mxu0 0
    %527 = vmatpush1.bf16.msra.mxu0 0
    %528 = vmatprep.subr.bf16.mxu0 0
    %529 = vmatpush1.bf16.msra.mxu0 0
    %530 = vmatprep.subr.bf16.mxu0 0
    %531 = vmatpush1.bf16.msra.mxu0 0
    %532 = vmatprep.subr.bf16.mxu0 0
    %533 = vmatpush1.bf16.msra.mxu0 0
    %534 = vmatprep.subr.bf16.mxu0 0
    %535 = vmatpush1.bf16.msra.mxu0 0
    %536 = vmatprep.subr.bf16.mxu0 0
    %537 = vmatpush1.bf16.msra.mxu0 0
    %538 = vmatprep.subr.bf16.mxu0 0
    %539 = vmatpush1.bf16.msra.mxu0 0
    %540 = vmatprep.subr.bf16.mxu0 0
    %541 = vmatpush1.bf16.msra.mxu0 0
    %542 = vmatprep.subr.bf16.mxu0 0
    %543 = vmatpush1.bf16.msra.mxu0 0
    %544 = vmatprep.subr.bf16.mxu0 0
    %545 = vmatpush1.bf16.msra.mxu0 0
    %546 = vmatprep.subr.bf16.mxu0 0
    %547 = vmatpush1.bf16.msra.mxu0 0
    %548 = vmatprep.subr.bf16.mxu0 0
    %549 = vmatpush1.bf16.msra.mxu0 0
    %550 = vmatprep.subr.bf16.mxu0 0
    %551 = vmatpush1.bf16.msra.mxu0 0
    %552 = vmatprep.mubr.bf16.mxu0 0
    %553 = vmatmul.mubr.bf16.gmra.mrb[0].mxu0 %v432
    %v554 = vpop.f32.mrb[0].mxu0
    %v555 = vadd.f32 %v225, %v554
    %v556 = vpop.f32.mrb[0].mxu0
    %v557 = vadd.f32 %v229, %v556
    %v558 = vpop.f32.mrb[0].mxu0
    %v559 = vadd.f32 %v225, %v558
    %v560 = vpop.f32.mrb[0].mxu0
    %v561 = vadd.f32 %v229, %v560
    %562 = vdwg.mxu0
    %563 = vmatprep.subr.bf16.mxu0 %v373
    %564 = vmatpush1.bf16.msra.mxu0 %v372
    %565 = vmatprep.subr.bf16.mxu0 %v389
    %566 = vmatpush1.bf16.msra.mxu0 %v388
    %567 = vmatprep.subr.bf16.mxu0 0
    %568 = vmatpush1.bf16.msra.mxu0 0
    %569 = vmatprep.subr.bf16.mxu0 0
    %570 = vmatpush1.bf16.msra.mxu0 0
    %571 = vmatprep.subr.bf16.mxu0 0
    %572 = vmatpush1.bf16.msra.mxu0 0
    %573 = vmatprep.subr.bf16.mxu0 0
    %574 = vmatpush1.bf16.msra.mxu0 0
    %575 = vmatprep.subr.bf16.mxu0 0
    %576 = vmatpush1.bf16.msra.mxu0 0
    %577 = vmatprep.subr.bf16.mxu0 0
    %578 = vmatpush1.bf16.msra.mxu0 0
    %579 = vmatprep.subr.bf16.mxu0 0
    %580 = vmatpush1.bf16.msra.mxu0 0
    %581 = vmatprep.subr.bf16.mxu0 0
    %582 = vmatpush1.bf16.msra.mxu0 0
    %583 = vmatprep.subr.bf16.mxu0 0
    %584 = vmatpush1.bf16.msra.mxu0 0
    %585 = vmatprep.subr.bf16.mxu0 0
    %586 = vmatpush1.bf16.msra.mxu0 0
    %587 = vmatprep.subr.bf16.mxu0 0
    %588 = vmatpush1.bf16.msra.mxu0 0
    %589 = vmatprep.subr.bf16.mxu0 0
    %590 = vmatpush1.bf16.msra.mxu0 0
    %591 = vmatprep.subr.bf16.mxu0 0
    %592 = vmatpush1.bf16.msra.mxu0 0
    %593 = vmatprep.subr.bf16.mxu0 0
    %594 = vmatpush1.bf16.msra.mxu0 0
    %595 = vmatprep.mubr.bf16.mxu0 0
    %596 = vmatmul.mubr.bf16.gmra.mrb[0].mxu0 %v432
    %v597 = vpop.f32.mrb[0].mxu0
    %v598 = vadd.f32 %v233, %v597
    %v599 = vpop.f32.mrb[0].mxu0
    %v600 = vadd.f32 %v237, %v599
    %v601 = vpop.f32.mrb[0].mxu0
    %v602 = vadd.f32 %v233, %v601
    %v603 = vpop.f32.mrb[0].mxu0
    %v604 = vadd.f32 %v237, %v603
    %605 = vdwg.mxu0
    %606 = vmatprep.subr.bf16.mxu0 %v375
    %607 = vmatpush1.bf16.msra.mxu0 %v374
    %608 = vmatprep.subr.bf16.mxu0 %v391
    %609 = vmatpush1.bf16.msra.mxu0 %v390
    %610 = vmatprep.subr.bf16.mxu0 0
    %611 = vmatpush1.bf16.msra.mxu0 0
    %612 = vmatprep.subr.bf16.mxu0 0
    %613 = vmatpush1.bf16.msra.mxu0 0
    %614 = vmatprep.subr.bf16.mxu0 0
    %615 = vmatpush1.bf16.msra.mxu0 0
    %616 = vmatprep.subr.bf16.mxu0 0
    %617 = vmatpush1.bf16.msra.mxu0 0
    %618 = vmatprep.subr.bf16.mxu0 0
    %619 = vmatpush1.bf16.msra.mxu0 0
    %620 = vmatprep.subr.bf16.mxu0 0
    %621 = vmatpush1.bf16.msra.mxu0 0
    %622 = vmatprep.subr.bf16.mxu0 0
    %623 = vmatpush1.bf16.msra.mxu0 0
    %624 = vmatprep.subr.bf16.mxu0 0
    %625 = vmatpush1.bf16.msra.mxu0 0
    %626 = vmatprep.subr.bf16.mxu0 0
    %627 = vmatpush1.bf16.msra.mxu0 0
    %628 = vmatprep.subr.bf16.mxu0 0
    %629 = vmatpush1.bf16.msra.mxu0 0
    %630 = vmatprep.subr.bf16.mxu0 0
    %631 = vmatpush1.bf16.msra.mxu0 0
    %632 = vmatprep.subr.bf16.mxu0 0
    %633 = vmatpush1.bf16.msra.mxu0 0
    %634 = vmatprep.subr.bf16.mxu0 0
    %635 = vmatpush1.bf16.msra.mxu0 0
    %636 = vmatprep.subr.bf16.mxu0 0
    %637 = vmatpush1.bf16.msra.mxu0 0
    %638 = vmatprep.mubr.bf16.mxu0 0
    %639 = vmatmul.mubr.bf16.gmra.mrb[0].mxu0 %v432
    %v640 = vpop.f32.mrb[0].mxu0
    %v641 = vadd.f32 %v241, %v640
    %v642 = vpop.f32.mrb[0].mxu0
    %v643 = vadd.f32 %v245, %v642
    %v644 = vpop.f32.mrb[0].mxu0
    %v645 = vadd.f32 %v241, %v644
    %v646 = vpop.f32.mrb[0].mxu0
    %v647 = vadd.f32 %v245, %v646
    %648 = vdwg.mxu0
    %649 = vmatprep.subr.bf16.mxu0 %v377
    %650 = vmatpush1.bf16.msra.mxu0 %v376
    %651 = vmatprep.subr.bf16.mxu0 %v393
    %652 = vmatpush1.bf16.msra.mxu0 %v392
    %653 = vmatprep.subr.bf16.mxu0 0
    %654 = vmatpush1.bf16.msra.mxu0 0
    %655 = vmatprep.subr.bf16.mxu0 0
    %656 = vmatpush1.bf16.msra.mxu0 0
    %657 = vmatprep.subr.bf16.mxu0 0
    %658 = vmatpush1.bf16.msra.mxu0 0
    %659 = vmatprep.subr.bf16.mxu0 0
    %660 = vmatpush1.bf16.msra.mxu0 0
    %661 = vmatprep.subr.bf16.mxu0 0
    %662 = vmatpush1.bf16.msra.mxu0 0
    %663 = vmatprep.subr.bf16.mxu0 0
    %664 = vmatpush1.bf16.msra.mxu0 0
    %665 = vmatprep.subr.bf16.mxu0 0
    %666 = vmatpush1.bf16.msra.mxu0 0
    %667 = vmatprep.subr.bf16.mxu0 0
    %668 = vmatpush1.bf16.msra.mxu0 0
    %669 = vmatprep.subr.bf16.mxu0 0
    %670 = vmatpush1.bf16.msra.mxu0 0
    %671 = vmatprep.subr.bf16.mxu0 0
    %672 = vmatpush1.bf16.msra.mxu0 0
    %673 = vmatprep.subr.bf16.mxu0 0
    %674 = vmatpush1.bf16.msra.mxu0 0
    %675 = vmatprep.subr.bf16.mxu0 0
    %676 = vmatpush1.bf16.msra.mxu0 0
    %677 = vmatprep.subr.bf16.mxu0 0
    %678 = vmatpush1.bf16.msra.mxu0 0
    %679 = vmatprep.subr.bf16.mxu0 0
    %680 = vmatpush1.bf16.msra.mxu0 0
    %681 = vmatprep.mubr.bf16.mxu0 0
    %682 = vmatmul.mubr.bf16.gmra.mrb[0].mxu0 %v432
    %v683 = vpop.f32.mrb[0].mxu0
    %v684 = vadd.f32 %v249, %v683
    %v685 = vpop.f32.mrb[0].mxu0
    %v686 = vadd.f32 %v253, %v685
    %v687 = vpop.f32.mrb[0].mxu0
    %v688 = vadd.f32 %v249, %v687
    %v689 = vpop.f32.mrb[0].mxu0
    %v690 = vadd.f32 %v253, %v689
    %691 = vdwg.mxu0
    %692 = vmatprep.subr.bf16.mxu0 %v379
    %693 = vmatpush1.bf16.msra.mxu0 %v378
    %694 = vmatprep.subr.bf16.mxu0 %v395
    %695 = vmatpush1.bf16.msra.mxu0 %v394
    %696 = vmatprep.subr.bf16.mxu0 0
    %697 = vmatpush1.bf16.msra.mxu0 0
    %698 = vmatprep.subr.bf16.mxu0 0
    %699 = vmatpush1.bf16.msra.mxu0 0
    %700 = vmatprep.subr.bf16.mxu0 0
    %701 = vmatpush1.bf16.msra.mxu0 0
    %702 = vmatprep.subr.bf16.mxu0 0
    %703 = vmatpush1.bf16.msra.mxu0 0
    %704 = vmatprep.subr.bf16.mxu0 0
    %705 = vmatpush1.bf16.msra.mxu0 0
    %706 = vmatprep.subr.bf16.mxu0 0
    %707 = vmatpush1.bf16.msra.mxu0 0
    %708 = vmatprep.subr.bf16.mxu0 0
    %709 = vmatpush1.bf16.msra.mxu0 0
    %710 = vmatprep.subr.bf16.mxu0 0
    %711 = vmatpush1.bf16.msra.mxu0 0
    %712 = vmatprep.subr.bf16.mxu0 0
    %713 = vmatpush1.bf16.msra.mxu0 0
    %714 = vmatprep.subr.bf16.mxu0 0
    %715 = vmatpush1.bf16.msra.mxu0 0
    %716 = vmatprep.subr.bf16.mxu0 0
    %717 = vmatpush1.bf16.msra.mxu0 0
    %718 = vmatprep.subr.bf16.mxu0 0
    %719 = vmatpush1.bf16.msra.mxu0 0
    %720 = vmatprep.subr.bf16.mxu0 0
    %721 = vmatpush1.bf16.msra.mxu0 0
    %722 = vmatprep.subr.bf16.mxu0 0
    %723 = vmatpush1.bf16.msra.mxu0 0
    %724 = vmatprep.mubr.bf16.mxu0 0
    %725 = vmatmul.mubr.bf16.gmra.mrb[0].mxu0 %v432
    %v726 = vpop.f32.mrb[0].mxu0
    %v727 = vadd.f32 %v257, %v726
    %v728 = vpop.f32.mrb[0].mxu0
    %v729 = vadd.f32 %v261, %v728
    %v730 = vpop.f32.mrb[0].mxu0
    %v731 = vadd.f32 %v257, %v730
    %v732 = vpop.f32.mrb[0].mxu0
    %v733 = vadd.f32 %v261, %v732
    %734 = vdwg.mxu0
    %735 = vmatprep.subr.bf16.mxu0 %v381
    %736 = vmatpush1.bf16.msra.mxu0 %v380
    %737 = vmatprep.subr.bf16.mxu0 %v397
    %738 = vmatpush1.bf16.msra.mxu0 %v396
    %739 = vmatprep.subr.bf16.mxu0 0
    %740 = vmatpush1.bf16.msra.mxu0 0
    %741 = vmatprep.subr.bf16.mxu0 0
    %742 = vmatpush1.bf16.msra.mxu0 0
    %743 = vmatprep.subr.bf16.mxu0 0
    %744 = vmatpush1.bf16.msra.mxu0 0
    %745 = vmatprep.subr.bf16.mxu0 0
    %746 = vmatpush1.bf16.msra.mxu0 0
    %747 = vmatprep.subr.bf16.mxu0 0
    %748 = vmatpush1.bf16.msra.mxu0 0
    %749 = vmatprep.subr.bf16.mxu0 0
    %750 = vmatpush1.bf16.msra.mxu0 0
    %751 = vmatprep.subr.bf16.mxu0 0
    %752 = vmatpush1.bf16.msra.mxu0 0
    %753 = vmatprep.subr.bf16.mxu0 0
    %754 = vmatpush1.bf16.msra.mxu0 0
    %755 = vmatprep.subr.bf16.mxu0 0
    %756 = vmatpush1.bf16.msra.mxu0 0
    %757 = vmatprep.subr.bf16.mxu0 0
    %758 = vmatpush1.bf16.msra.mxu0 0
    %759 = vmatprep.subr.bf16.mxu0 0
    %760 = vmatpush1.bf16.msra.mxu0 0
    %761 = vmatprep.subr.bf16.mxu0 0
    %762 = vmatpush1.bf16.msra.mxu0 0
    %763 = vmatprep.subr.bf16.mxu0 0
    %764 = vmatpush1.bf16.msra.mxu0 0
    %765 = vmatprep.subr.bf16.mxu0 0
    %766 = vmatpush1.bf16.msra.mxu0 0
    %767 = vmatprep.mubr.bf16.mxu0 0
    %768 = vmatmul.mubr.bf16.gmra.mrb[0].mxu0 %v432
    %v769 = vpop.f32.mrb[0].mxu0
    %v770 = vadd.f32 %v265, %v769
    %v771 = vpop.f32.mrb[0].mxu0
    %v772 = vadd.f32 %v269, %v771
    %v773 = vpop.f32.mrb[0].mxu0
    %v774 = vadd.f32 %v265, %v773
    %v775 = vpop.f32.mrb[0].mxu0
    %v776 = vadd.f32 %v269, %v775
    %777 = vdwg.mxu0
    %v778 = vadd.f32 %v469, %v471
    %v779 = vadd.f32 %v778, %v512
    %v780 = vadd.f32 %v779, %v514
    %v781 = vadd.f32 %v780, %v555
    %v782 = vadd.f32 %v781, %v557
    %v783 = vadd.f32 %v782, %v598
    %v784 = vadd.f32 %v783, %v600
    %v785 = vadd.f32 %v784, %v641
    %v786 = vadd.f32 %v785, %v643
    %v787 = vadd.f32 %v786, %v684
    %v788 = vadd.f32 %v787, %v686
    %v789 = vadd.f32 %v788, %v727
    %v790 = vadd.f32 %v789, %v729
    %v791 = vadd.f32 %v790, %v770
    %v792 = vadd.f32 %v791, %v772
    %793 = vadd.xlane.f32.xlu0 %v792
    %v794 = vpop.xlane.xlu0 %793
    %v795 = vadd.f32 %v473, %v475
    %v796 = vadd.f32 %v795, %v516
    %v797 = vadd.f32 %v796, %v518
    %v798 = vadd.f32 %v797, %v559
    %v799 = vadd.f32 %v798, %v561
    %v800 = vadd.f32 %v799, %v602
    %v801 = vadd.f32 %v800, %v604
    %v802 = vadd.f32 %v801, %v645
    %v803 = vadd.f32 %v802, %v647
    %v804 = vadd.f32 %v803, %v688
    %v805 = vadd.f32 %v804, %v690
    %v806 = vadd.f32 %v805, %v731
    %v807 = vadd.f32 %v806, %v733
    %v808 = vadd.f32 %v807, %v774
    %v809 = vadd.f32 %v808, %v776
    %810 = vadd.xlane.f32.xlu0 %v809
    %v811 = vpop.xlane.xlu0 %810
    %v812 = vmul.f32 %v794, 0.00048828125
    %v813 = vmul.f32 %v811, 0.00048828125
    %v814 = vmul.f32 %v469, %v469
    %v815 = vmul.f32 %v471, %v471
    %v816 = vmul.f32 %v512, %v512
    %v817 = vmul.f32 %v514, %v514
    %v818 = vmul.f32 %v555, %v555
    %v819 = vmul.f32 %v557, %v557
    %v820 = vmul.f32 %v598, %v598
    %v821 = vmul.f32 %v600, %v600
    %v822 = vmul.f32 %v641, %v641
    %v823 = vmul.f32 %v643, %v643
    %v824 = vmul.f32 %v684, %v684
    %v825 = vmul.f32 %v686, %v686
    %v826 = vmul.f32 %v727, %v727
    %v827 = vmul.f32 %v729, %v729
    %v828 = vmul.f32 %v770, %v770
    %v829 = vmul.f32 %v772, %v772
    %v830 = vmul.f32 %v473, %v473
    %v831 = vmul.f32 %v475, %v475
    %v832 = vmul.f32 %v516, %v516
    %v833 = vmul.f32 %v518, %v518
    %v834 = vmul.f32 %v559, %v559
    %v835 = vmul.f32 %v561, %v561
    %v836 = vmul.f32 %v602, %v602
    %v837 = vmul.f32 %v604, %v604
    %v838 = vmul.f32 %v645, %v645
    %v839 = vmul.f32 %v647, %v647
    %v840 = vmul.f32 %v688, %v688
    %v841 = vmul.f32 %v690, %v690
    %v842 = vmul.f32 %v731, %v731
    %v843 = vmul.f32 %v733, %v733
    %v844 = vmul.f32 %v774, %v774
    %v845 = vmul.f32 %v776, %v776
    %v846 = vadd.f32 %v814, %v815
    %v847 = vadd.f32 %v846, %v816
    %v848 = vadd.f32 %v847, %v817
    %v849 = vadd.f32 %v848, %v818
    %v850 = vadd.f32 %v849, %v819
    %v851 = vadd.f32 %v850, %v820
    %v852 = vadd.f32 %v851, %v821
    %v853 = vadd.f32 %v852, %v822
    %v854 = vadd.f32 %v853, %v823
    %v855 = vadd.f32 %v854, %v824
    %v856 = vadd.f32 %v855, %v825
    %v857 = vadd.f32 %v856, %v826
    %v858 = vadd.f32 %v857, %v827
    %v859 = vadd.f32 %v858, %v828
    %v860 = vadd.f32 %v859, %v829
    %861 = vadd.xlane.f32.xlu0 %v860
    %v862 = vpop.xlane.xlu0 %861
    %v863 = vadd.f32 %v830, %v831
    %v864 = vadd.f32 %v863, %v832
    %v865 = vadd.f32 %v864, %v833
    %v866 = vadd.f32 %v865, %v834
    %v867 = vadd.f32 %v866, %v835
    %v868 = vadd.f32 %v867, %v836
    %v869 = vadd.f32 %v868, %v837
    %v870 = vadd.f32 %v869, %v838
    %v871 = vadd.f32 %v870, %v839
    %v872 = vadd.f32 %v871, %v840
    %v873 = vadd.f32 %v872, %v841
    %v874 = vadd.f32 %v873, %v842
    %v875 = vadd.f32 %v874, %v843
    %v876 = vadd.f32 %v875, %v844
    %v877 = vadd.f32 %v876, %v845
    %878 = vadd.xlane.f32.xlu0 %v877
    %v879 = vpop.xlane.xlu0 %878
    %v880 = vmul.f32 %v862, 0.00048828125
    %v881 = vmul.f32 %v879, 0.00048828125
    %v882 = vmul.f32 %v812, %v812
    %v883 = vmul.f32 %v813, %v813
    %v884 = vsub.f32 %v880, %v882
    %v885 = vsub.f32 %v881, %v883
    %v886 = vmax.f32 %v884, 0.0
    %v887 = vmax.f32 %v885, 0.0
    %v888 = vadd.f32 %v886, 1e-05
    %v889 = vadd.f32 %v887, 1e-05
    %v890 = vrsqrt.pop %v888
    %v891 = vrsqrt.pop %v889
    %v892 = vsub.f32 %v469, %v812
    %v893 = vsub.f32 %v471, %v812
    %v894 = vsub.f32 %v512, %v812
    %v895 = vsub.f32 %v514, %v812
    %v896 = vsub.f32 %v555, %v812
    %v897 = vsub.f32 %v557, %v812
    %v898 = vsub.f32 %v598, %v812
    %v899 = vsub.f32 %v600, %v812
    %v900 = vsub.f32 %v641, %v812
    %v901 = vsub.f32 %v643, %v812
    %v902 = vsub.f32 %v684, %v812
    %v903 = vsub.f32 %v686, %v812
    %v904 = vsub.f32 %v727, %v812
    %v905 = vsub.f32 %v729, %v812
    %v906 = vsub.f32 %v770, %v812
    %v907 = vsub.f32 %v772, %v812
    %v908 = vsub.f32 %v473, %v813
    %v909 = vsub.f32 %v475, %v813
    %v910 = vsub.f32 %v516, %v813
    %v911 = vsub.f32 %v518, %v813
    %v912 = vsub.f32 %v559, %v813
    %v913 = vsub.f32 %v561, %v813
    %v914 = vsub.f32 %v602, %v813
    %v915 = vsub.f32 %v604, %v813
    %v916 = vsub.f32 %v645, %v813
    %v917 = vsub.f32 %v647, %v813
    %v918 = vsub.f32 %v688, %v813
    %v919 = vsub.f32 %v690, %v813
    %v920 = vsub.f32 %v731, %v813
    %v921 = vsub.f32 %v733, %v813
    %v922 = vsub.f32 %v774, %v813
    %v923 = vsub.f32 %v776, %v813
    %v924 = vpack.c.bf16 %v908, %v892
    %v925 = vpack.c.bf16 %v909, %v893
    %v926 = vpack.c.bf16 %v910, %v894
    %v927 = vpack.c.bf16 %v911, %v895
    %v928 = vpack.c.bf16 %v912, %v896
    %v929 = vpack.c.bf16 %v913, %v897
    %v930 = vpack.c.bf16 %v914, %v898
    %v931 = vpack.c.bf16 %v915, %v899
    %v932 = vpack.c.bf16 %v916, %v900
    %v933 = vpack.c.bf16 %v917, %v901
    %v934 = vpack.c.bf16 %v918, %v902
    %v935 = vpack.c.bf16 %v919, %v903
    %v936 = vpack.c.bf16 %v920, %v904
    %v937 = vpack.c.bf16 %v921, %v905
    %v938 = vpack.c.bf16 %v922, %v906
    %v939 = vpack.c.bf16 %v923, %v907
    %v940 = vpack.c.bf16 %v891, %v890
    %v941 = vmul.bf16 %v924, %v940
    %v942 = vmul.bf16 %v925, %v940
    %v943 = vmul.bf16 %v926, %v940
    %v944 = vmul.bf16 %v927, %v940
    %v945 = vmul.bf16 %v928, %v940
    %v946 = vmul.bf16 %v929, %v940
    %v947 = vmul.bf16 %v930, %v940
    %v948 = vmul.bf16 %v931, %v940
    %v949 = vmul.bf16 %v932, %v940
    %v950 = vmul.bf16 %v933, %v940
    %v951 = vmul.bf16 %v934, %v940
    %v952 = vmul.bf16 %v935, %v940
    %v953 = vmul.bf16 %v936, %v940
    %v954 = vmul.bf16 %v937, %v940
    %v955 = vmul.bf16 %v938, %v940
    %v956 = vmul.bf16 %v939, %v940
    %v957 = vlaneseq
    %v958 = vshrl.u32 %v957, 7
    %v959 = vsub.s32 1, %v958
    %v960 = vrot.slane %v78, %v959
    %v961 = vlaneseq
    %v962 = vshrl.u32 %v961, 7
    %v963 = vsub.s32 5, %v962
    %v964 = vrot.slane %v78, %v963
    %v965 = vlaneseq
    %v966 = vshrl.u32 %v965, 7
    %v967 = vsub.s32 1, %v966
    %v968 = vrot.slane %v79, %v967
    %v969 = vlaneseq
    %v970 = vshrl.u32 %v969, 7
    %v971 = vsub.s32 5, %v970
    %v972 = vrot.slane %v79, %v971
    %v973 = vlaneseq
    %v974 = vshrl.u32 %v973, 7
    %v975 = vsub.s32 1, %v974
    %v976 = vrot.slane %v80, %v975
    %v977 = vlaneseq
    %v978 = vshrl.u32 %v977, 7
    %v979 = vsub.s32 5, %v978
    %v980 = vrot.slane %v80, %v979
    %v981 = vlaneseq
    %v982 = vshrl.u32 %v981, 7
    %v983 = vsub.s32 1, %v982
    %v984 = vrot.slane %v81, %v983
    %v985 = vlaneseq
    %v986 = vshrl.u32 %v985, 7
    %v987 = vsub.s32 5, %v986
    %v988 = vrot.slane %v81, %v987
    %v989 = vlaneseq
    %v990 = vshrl.u32 %v989, 7
    %v991 = vsub.s32 1, %v990
    %v992 = vrot.slane %v82, %v991
    %v993 = vlaneseq
    %v994 = vshrl.u32 %v993, 7
    %v995 = vsub.s32 5, %v994
    %v996 = vrot.slane %v82, %v995
    %v997 = vlaneseq
    %v998 = vshrl.u32 %v997, 7
    %v999 = vsub.s32 1, %v998
    %v1000 = vrot.slane %v83, %v999
    %v1001 = vlaneseq
    %v1002 = vshrl.u32 %v1001, 7
    %v1003 = vsub.s32 5, %v1002
    %v1004 = vrot.slane %v83, %v1003
    %v1005 = vlaneseq
    %v1006 = vshrl.u32 %v1005, 7
    %v1007 = vsub.s32 1, %v1006
    %v1008 = vrot.slane %v84, %v1007
    %v1009 = vlaneseq
    %v1010 = vshrl.u32 %v1009, 7
    %v1011 = vsub.s32 5, %v1010
    %v1012 = vrot.slane %v84, %v1011
    %v1013 = vlaneseq
    %v1014 = vshrl.u32 %v1013, 7
    %v1015 = vsub.s32 1, %v1014
    %v1016 = vrot.slane %v85, %v1015
    %v1017 = vlaneseq
    %v1018 = vshrl.u32 %v1017, 7
    %v1019 = vsub.s32 5, %v1018
    %v1020 = vrot.slane %v85, %v1019
    %v1037 = vpack.c.bf16 %v960, %v960
    %v1038 = vpack.c.bf16 %v964, %v964
    %v1039 = vpack.c.bf16 %v968, %v968
    %v1040 = vpack.c.bf16 %v972, %v972
    %v1041 = vpack.c.bf16 %v976, %v976
    %v1042 = vpack.c.bf16 %v980, %v980
    %v1043 = vpack.c.bf16 %v984, %v984
    %v1044 = vpack.c.bf16 %v988, %v988
    %v1045 = vpack.c.bf16 %v992, %v992
    %v1046 = vpack.c.bf16 %v996, %v996
    %v1047 = vpack.c.bf16 %v1000, %v1000
    %v1048 = vpack.c.bf16 %v1004, %v1004
    %v1049 = vpack.c.bf16 %v1008, %v1008
    %v1050 = vpack.c.bf16 %v1012, %v1012
    %v1051 = vpack.c.bf16 %v1016, %v1016
    %v1052 = vpack.c.bf16 %v1020, %v1020
    %v1054 = vshrl.u32 %v1037, 16
    %v1055 = vpack.i.b16 %v1054, %v1054
    %v1057 = vlaneseq
    %v1058 = vshrl.u32 %v1057, 7
    %v1059 = vsub.s32 0, %v1058
    %v1060 = vrot.slane %v1055, %v1059
    %v1062 = vshrl.u32 %v1038, 16
    %v1063 = vpack.i.b16 %v1062, %v1062
    %v1065 = vlaneseq
    %v1066 = vshrl.u32 %v1065, 7
    %v1067 = vsub.s32 0, %v1066
    %v1068 = vrot.slane %v1063, %v1067
    %v1070 = vshrl.u32 %v1039, 16
    %v1071 = vpack.i.b16 %v1070, %v1070
    %v1073 = vlaneseq
    %v1074 = vshrl.u32 %v1073, 7
    %v1075 = vsub.s32 0, %v1074
    %v1076 = vrot.slane %v1071, %v1075
    %v1078 = vshrl.u32 %v1040, 16
    %v1079 = vpack.i.b16 %v1078, %v1078
    %v1081 = vlaneseq
    %v1082 = vshrl.u32 %v1081, 7
    %v1083 = vsub.s32 0, %v1082
    %v1084 = vrot.slane %v1079, %v1083
    %v1086 = vshrl.u32 %v1041, 16
    %v1087 = vpack.i.b16 %v1086, %v1086
    %v1089 = vlaneseq
    %v1090 = vshrl.u32 %v1089, 7
    %v1091 = vsub.s32 0, %v1090
    %v1092 = vrot.slane %v1087, %v1091
    %v1094 = vshrl.u32 %v1042, 16
    %v1095 = vpack.i.b16 %v1094, %v1094
    %v1097 = vlaneseq
    %v1098 = vshrl.u32 %v1097, 7
    %v1099 = vsub.s32 0, %v1098
    %v1100 = vrot.slane %v1095, %v1099
    %v1102 = vshrl.u32 %v1043, 16
    %v1103 = vpack.i.b16 %v1102, %v1102
    %v1105 = vlaneseq
    %v1106 = vshrl.u32 %v1105, 7
    %v1107 = vsub.s32 0, %v1106
    %v1108 = vrot.slane %v1103, %v1107
    %v1110 = vshrl.u32 %v1044, 16
    %v1111 = vpack.i.b16 %v1110, %v1110
    %v1113 = vlaneseq
    %v1114 = vshrl.u32 %v1113, 7
    %v1115 = vsub.s32 0, %v1114
    %v1116 = vrot.slane %v1111, %v1115
    %v1118 = vshrl.u32 %v1045, 16
    %v1119 = vpack.i.b16 %v1118, %v1118
    %v1121 = vlaneseq
    %v1122 = vshrl.u32 %v1121, 7
    %v1123 = vsub.s32 0, %v1122
    %v1124 = vrot.slane %v1119, %v1123
    %v1126 = vshrl.u32 %v1046, 16
    %v1127 = vpack.i.b16 %v1126, %v1126
    %v1129 = vlaneseq
    %v1130 = vshrl.u32 %v1129, 7
    %v1131 = vsub.s32 0, %v1130
    %v1132 = vrot.slane %v1127, %v1131
    %v1134 = vshrl.u32 %v1047, 16
    %v1135 = vpack.i.b16 %v1134, %v1134
    %v1137 = vlaneseq
    %v1138 = vshrl.u32 %v1137, 7
    %v1139 = vsub.s32 0, %v1138
    %v1140 = vrot.slane %v1135, %v1139
    %v1142 = vshrl.u32 %v1048, 16
    %v1143 = vpack.i.b16 %v1142, %v1142
    %v1145 = vlaneseq
    %v1146 = vshrl.u32 %v1145, 7
    %v1147 = vsub.s32 0, %v1146
    %v1148 = vrot.slane %v1143, %v1147
    %v1150 = vshrl.u32 %v1049, 16
    %v1151 = vpack.i.b16 %v1150, %v1150
    %v1153 = vlaneseq
    %v1154 = vshrl.u32 %v1153, 7
    %v1155 = vsub.s32 0, %v1154
    %v1156 = vrot.slane %v1151, %v1155
    %v1158 = vshrl.u32 %v1050, 16
    %v1159 = vpack.i.b16 %v1158, %v1158
    %v1161 = vlaneseq
    %v1162 = vshrl.u32 %v1161, 7
    %v1163 = vsub.s32 0, %v1162
    %v1164 = vrot.slane %v1159, %v1163
    %v1166 = vshrl.u32 %v1051, 16
    %v1167 = vpack.i.b16 %v1166, %v1166
    %v1169 = vlaneseq
    %v1170 = vshrl.u32 %v1169, 7
    %v1171 = vsub.s32 0, %v1170
    %v1172 = vrot.slane %v1167, %v1171
    %v1174 = vshrl.u32 %v1052, 16
    %v1175 = vpack.i.b16 %v1174, %v1174
    %v1177 = vlaneseq
    %v1178 = vshrl.u32 %v1177, 7
    %v1179 = vsub.s32 0, %v1178
    %v1180 = vrot.slane %v1175, %v1179
    %v1181 = vmul.bf16 %v941, %v1060
    %v1182 = vmul.bf16 %v942, %v1068
    %v1183 = vmul.bf16 %v943, %v1076
    %v1184 = vmul.bf16 %v944, %v1084
    %v1185 = vmul.bf16 %v945, %v1092
    %v1186 = vmul.bf16 %v946, %v1100
    %v1187 = vmul.bf16 %v947, %v1108
    %v1188 = vmul.bf16 %v948, %v1116
    %v1189 = vmul.bf16 %v949, %v1124
    %v1190 = vmul.bf16 %v950, %v1132
    %v1191 = vmul.bf16 %v951, %v1140
    %v1192 = vmul.bf16 %v952, %v1148
    %v1193 = vmul.bf16 %v953, %v1156
    %v1194 = vmul.bf16 %v954, %v1164
    %v1195 = vmul.bf16 %v955, %v1172
    %v1196 = vmul.bf16 %v956, %v1180
    %v1197 = vlaneseq
    %v1198 = vshrl.u32 %v1197, 7
    %v1199 = vsub.s32 2, %v1198
    %v1200 = vrot.slane %v78, %v1199
    %v1201 = vlaneseq
    %v1202 = vshrl.u32 %v1201, 7
    %v1203 = vsub.s32 6, %v1202
    %v1204 = vrot.slane %v78, %v1203
    %v1205 = vlaneseq
    %v1206 = vshrl.u32 %v1205, 7
    %v1207 = vsub.s32 2, %v1206
    %v1208 = vrot.slane %v79, %v1207
    %v1209 = vlaneseq
    %v1210 = vshrl.u32 %v1209, 7
    %v1211 = vsub.s32 6, %v1210
    %v1212 = vrot.slane %v79, %v1211
    %v1213 = vlaneseq
    %v1214 = vshrl.u32 %v1213, 7
    %v1215 = vsub.s32 2, %v1214
    %v1216 = vrot.slane %v80, %v1215
    %v1217 = vlaneseq
    %v1218 = vshrl.u32 %v1217, 7
    %v1219 = vsub.s32 6, %v1218
    %v1220 = vrot.slane %v80, %v1219
    %v1221 = vlaneseq
    %v1222 = vshrl.u32 %v1221, 7
    %v1223 = vsub.s32 2, %v1222
    %v1224 = vrot.slane %v81, %v1223
    %v1225 = vlaneseq
    %v1226 = vshrl.u32 %v1225, 7
    %v1227 = vsub.s32 6, %v1226
    %v1228 = vrot.slane %v81, %v1227
    %v1229 = vlaneseq
    %v1230 = vshrl.u32 %v1229, 7
    %v1231 = vsub.s32 2, %v1230
    %v1232 = vrot.slane %v82, %v1231
    %v1233 = vlaneseq
    %v1234 = vshrl.u32 %v1233, 7
    %v1235 = vsub.s32 6, %v1234
    %v1236 = vrot.slane %v82, %v1235
    %v1237 = vlaneseq
    %v1238 = vshrl.u32 %v1237, 7
    %v1239 = vsub.s32 2, %v1238
    %v1240 = vrot.slane %v83, %v1239
    %v1241 = vlaneseq
    %v1242 = vshrl.u32 %v1241, 7
    %v1243 = vsub.s32 6, %v1242
    %v1244 = vrot.slane %v83, %v1243
    %v1245 = vlaneseq
    %v1246 = vshrl.u32 %v1245, 7
    %v1247 = vsub.s32 2, %v1246
    %v1248 = vrot.slane %v84, %v1247
    %v1249 = vlaneseq
    %v1250 = vshrl.u32 %v1249, 7
    %v1251 = vsub.s32 6, %v1250
    %v1252 = vrot.slane %v84, %v1251
    %v1253 = vlaneseq
    %v1254 = vshrl.u32 %v1253, 7
    %v1255 = vsub.s32 2, %v1254
    %v1256 = vrot.slane %v85, %v1255
    %v1257 = vlaneseq
    %v1258 = vshrl.u32 %v1257, 7
    %v1259 = vsub.s32 6, %v1258
    %v1260 = vrot.slane %v85, %v1259
    %v1277 = vpack.c.bf16 %v1200, %v1200
    %v1278 = vpack.c.bf16 %v1204, %v1204
    %v1279 = vpack.c.bf16 %v1208, %v1208
    %v1280 = vpack.c.bf16 %v1212, %v1212
    %v1281 = vpack.c.bf16 %v1216, %v1216
    %v1282 = vpack.c.bf16 %v1220, %v1220
    %v1283 = vpack.c.bf16 %v1224, %v1224
    %v1284 = vpack.c.bf16 %v1228, %v1228
    %v1285 = vpack.c.bf16 %v1232, %v1232
    %v1286 = vpack.c.bf16 %v1236, %v1236
    %v1287 = vpack.c.bf16 %v1240, %v1240
    %v1288 = vpack.c.bf16 %v1244, %v1244
    %v1289 = vpack.c.bf16 %v1248, %v1248
    %v1290 = vpack.c.bf16 %v1252, %v1252
    %v1291 = vpack.c.bf16 %v1256, %v1256
    %v1292 = vpack.c.bf16 %v1260, %v1260
    %v1294 = vpack.i.b16 %v1277, %v1277
    %v1296 = vlaneseq
    %v1297 = vshrl.u32 %v1296, 7
    %v1298 = vsub.s32 1, %v1297
    %v1299 = vrot.slane %v1294, %v1298
    %v1301 = vpack.i.b16 %v1278, %v1278
    %v1303 = vlaneseq
    %v1304 = vshrl.u32 %v1303, 7
    %v1305 = vsub.s32 1, %v1304
    %v1306 = vrot.slane %v1301, %v1305
    %v1308 = vpack.i.b16 %v1279, %v1279
    %v1310 = vlaneseq
    %v1311 = vshrl.u32 %v1310, 7
    %v1312 = vsub.s32 1, %v1311
    %v1313 = vrot.slane %v1308, %v1312
    %v1315 = vpack.i.b16 %v1280, %v1280
    %v1317 = vlaneseq
    %v1318 = vshrl.u32 %v1317, 7
    %v1319 = vsub.s32 1, %v1318
    %v1320 = vrot.slane %v1315, %v1319
    %v1322 = vpack.i.b16 %v1281, %v1281
    %v1324 = vlaneseq
    %v1325 = vshrl.u32 %v1324, 7
    %v1326 = vsub.s32 1, %v1325
    %v1327 = vrot.slane %v1322, %v1326
    %v1329 = vpack.i.b16 %v1282, %v1282
    %v1331 = vlaneseq
    %v1332 = vshrl.u32 %v1331, 7
    %v1333 = vsub.s32 1, %v1332
    %v1334 = vrot.slane %v1329, %v1333
    %v1336 = vpack.i.b16 %v1283, %v1283
    %v1338 = vlaneseq
    %v1339 = vshrl.u32 %v1338, 7
    %v1340 = vsub.s32 1, %v1339
    %v1341 = vrot.slane %v1336, %v1340
    %v1343 = vpack.i.b16 %v1284, %v1284
    %v1345 = vlaneseq
    %v1346 = vshrl.u32 %v1345, 7
    %v1347 = vsub.s32 1, %v1346
    %v1348 = vrot.slane %v1343, %v1347
    %v1350 = vpack.i.b16 %v1285, %v1285
    %v1352 = vlaneseq
    %v1353 = vshrl.u32 %v1352, 7
    %v1354 = vsub.s32 1, %v1353
    %v1355 = vrot.slane %v1350, %v1354
    %v1357 = vpack.i.b16 %v1286, %v1286
    %v1359 = vlaneseq
    %v1360 = vshrl.u32 %v1359, 7
    %v1361 = vsub.s32 1, %v1360
    %v1362 = vrot.slane %v1357, %v1361
    %v1364 = vpack.i.b16 %v1287, %v1287
    %v1366 = vlaneseq
    %v1367 = vshrl.u32 %v1366, 7
    %v1368 = vsub.s32 1, %v1367
    %v1369 = vrot.slane %v1364, %v1368
    %v1371 = vpack.i.b16 %v1288, %v1288
    %v1373 = vlaneseq
    %v1374 = vshrl.u32 %v1373, 7
    %v1375 = vsub.s32 1, %v1374
    %v1376 = vrot.slane %v1371, %v1375
    %v1378 = vpack.i.b16 %v1289, %v1289
    %v1380 = vlaneseq
    %v1381 = vshrl.u32 %v1380, 7
    %v1382 = vsub.s32 1, %v1381
    %v1383 = vrot.slane %v1378, %v1382
    %v1385 = vpack.i.b16 %v1290, %v1290
    %v1387 = vlaneseq
    %v1388 = vshrl.u32 %v1387, 7
    %v1389 = vsub.s32 1, %v1388
    %v1390 = vrot.slane %v1385, %v1389
    %v1392 = vpack.i.b16 %v1291, %v1291
    %v1394 = vlaneseq
    %v1395 = vshrl.u32 %v1394, 7
    %v1396 = vsub.s32 1, %v1395
    %v1397 = vrot.slane %v1392, %v1396
    %v1399 = vpack.i.b16 %v1292, %v1292
    %v1401 = vlaneseq
    %v1402 = vshrl.u32 %v1401, 7
    %v1403 = vsub.s32 1, %v1402
    %v1404 = vrot.slane %v1399, %v1403
    %v1405 = vadd.bf16 %v1181, %v1299
    %v1406 = vadd.bf16 %v1182, %v1306
    %v1407 = vadd.bf16 %v1183, %v1313
    %v1408 = vadd.bf16 %v1184, %v1320
    %v1409 = vadd.bf16 %v1185, %v1327
    %v1410 = vadd.bf16 %v1186, %v1334
    %v1411 = vadd.bf16 %v1187, %v1341
    %v1412 = vadd.bf16 %v1188, %v1348
    %v1413 = vadd.bf16 %v1189, %v1355
    %v1414 = vadd.bf16 %v1190, %v1362
    %v1415 = vadd.bf16 %v1191, %v1369
    %v1416 = vadd.bf16 %v1192, %v1376
    %v1417 = vadd.bf16 %v1193, %v1383
    %v1418 = vadd.bf16 %v1194, %v1390
    %v1419 = vadd.bf16 %v1195, %v1397
    %v1420 = vadd.bf16 %v1196, %v1404
    %v1421 = vmax.bf16 %v1405, 0
    %v1422 = vmax.bf16 %v1406, 0
    %v1423 = vmax.bf16 %v1407, 0
    %v1424 = vmax.bf16 %v1408, 0
    %v1425 = vmax.bf16 %v1409, 0
    %v1426 = vmax.bf16 %v1410, 0
    %v1427 = vmax.bf16 %v1411, 0
    %v1428 = vmax.bf16 %v1412, 0
    %v1429 = vmax.bf16 %v1413, 0
    %v1430 = vmax.bf16 %v1414, 0
    %v1431 = vmax.bf16 %v1415, 0
    %v1432 = vmax.bf16 %v1416, 0
    %v1433 = vmax.bf16 %v1417, 0
    %v1434 = vmax.bf16 %v1418, 0
    %v1435 = vmax.bf16 %v1419, 0
    %v1436 = vmax.bf16 %v1420, 0
    %v1437 = vld [vmem:[%s4] sm:$0x77]
    %v1438 = vld [vmem:[#allocation8] sm:$0xff]
    %v1439 = vld [vmem:[#allocation8 + $0x8] sm:$0xff]
    %v1440 = vld [vmem:[#allocation8 + $0x10] sm:$0xff]
    %v1441 = vld [vmem:[#allocation8 + $0x18] sm:$0xff]
    %v1442 = vld [vmem:[#allocation8 + $0x20] sm:$0xff]
    %v1443 = vld [vmem:[#allocation8 + $0x28] sm:$0xff]
    %v1444 = vld [vmem:[#allocation8 + $0x30] sm:$0xff]
    %v1445 = vld [vmem:[#allocation8 + $0x38] sm:$0xff]
    %v1446 = vld [vmem:[#allocation8 + $0x40] sm:$0xff]
    %v1447 = vld [vmem:[#allocation8 + $0x48] sm:$0xff]
    %v1448 = vld [vmem:[#allocation8 + $0x50] sm:$0xff]
    %v1449 = vld [vmem:[#allocation8 + $0x58] sm:$0xff]
    %v1450 = vld [vmem:[#allocation8 + $0x60] sm:$0xff]
    %v1451 = vld [vmem:[#allocation8 + $0x68] sm:$0xff]
    %v1452 = vld [vmem:[#allocation8 + $0x70] sm:$0xff]
    %v1453 = vld [vmem:[#allocation8 + $0x78] sm:$0xff]
    %v1454 = vld [vmem:[#allocation8 + $0x80] sm:$0xff]
    %v1455 = vld [vmem:[#allocation8 + $0x88] sm:$0xff]
    %v1456 = vld [vmem:[#allocation8 + $0x90] sm:$0xff]
    %v1457 = vld [vmem:[#allocation8 + $0x98] sm:$0xff]
    %v1458 = vld [vmem:[#allocation8 + $0xa0] sm:$0xff]
    %v1459 = vld [vmem:[#allocation8 + $0xa8] sm:$0xff]
    %v1460 = vld [vmem:[#allocation8 + $0xb0] sm:$0xff]
    %v1461 = vld [vmem:[#allocation8 + $0xb8] sm:$0xff]
    %v1462 = vld [vmem:[#allocation8 + $0xc0] sm:$0xff]
    %v1463 = vld [vmem:[#allocation8 + $0xc8] sm:$0xff]
    %v1464 = vld [vmem:[#allocation8 + $0xd0] sm:$0xff]
    %v1465 = vld [vmem:[#allocation8 + $0xd8] sm:$0xff]
    %v1466 = vld [vmem:[#allocation8 + $0xe0] sm:$0xff]
    %v1467 = vld [vmem:[#allocation8 + $0xe8] sm:$0xff]
    %v1468 = vld [vmem:[#allocation8 + $0xf0] sm:$0xff]
    %v1469 = vld [vmem:[#allocation8 + $0xf8] sm:$0xff]
    %v1470 = vld [vmem:[#allocation8 + $0x100] sm:$0xff]
    %v1471 = vld [vmem:[#allocation8 + $0x108] sm:$0xff]
    %v1472 = vld [vmem:[#allocation8 + $0x110] sm:$0xff]
    %v1473 = vld [vmem:[#allocation8 + $0x118] sm:$0xff]
    %v1474 = vld [vmem:[#allocation8 + $0x120] sm:$0xff]
    %v1475 = vld [vmem:[#allocation8 + $0x128] sm:$0xff]
    %v1476 = vld [vmem:[#allocation8 + $0x130] sm:$0xff]
    %v1477 = vld [vmem:[#allocation8 + $0x138] sm:$0xff]
    %v1478 = vld [vmem:[#allocation8 + $0x140] sm:$0xff]
    %v1479 = vld [vmem:[#allocation8 + $0x148] sm:$0xff]
    %v1480 = vld [vmem:[#allocation8 + $0x150] sm:$0xff]
    %v1481 = vld [vmem:[#allocation8 + $0x158] sm:$0xff]
    %v1482 = vld [vmem:[#allocation8 + $0x160] sm:$0xff]
    %v1483 = vld [vmem:[#allocation8 + $0x168] sm:$0xff]
    %v1484 = vld [vmem:[#allocation8 + $0x170] sm:$0xff]
    %v1485 = vld [vmem:[#allocation8 + $0x178] sm:$0xff]
    %v1486 = vld [vmem:[#allocation8 + $0x180] sm:$0xff]
    %v1487 = vld [vmem:[#allocation8 + $0x188] sm:$0xff]
    %v1488 = vld [vmem:[#allocation8 + $0x190] sm:$0xff]
    %v1489 = vld [vmem:[#allocation8 + $0x198] sm:$0xff]
    %v1490 = vld [vmem:[#allocation8 + $0x1a0] sm:$0xff]
    %v1491 = vld [vmem:[#allocation8 + $0x1a8] sm:$0xff]
    %v1492 = vld [vmem:[#allocation8 + $0x1b0] sm:$0xff]
    %v1493 = vld [vmem:[#allocation8 + $0x1b8] sm:$0xff]
    %v1494 = vld [vmem:[#allocation8 + $0x1c0] sm:$0xff]
    %v1495 = vld [vmem:[#allocation8 + $0x1c8] sm:$0xff]
    %v1496 = vld [vmem:[#allocation8 + $0x1d0] sm:$0xff]
    %v1497 = vld [vmem:[#allocation8 + $0x1d8] sm:$0xff]
    %v1498 = vld [vmem:[#allocation8 + $0x1e0] sm:$0xff]
    %v1499 = vld [vmem:[#allocation8 + $0x1e8] sm:$0xff]
    %v1500 = vld [vmem:[#allocation8 + $0x1f0] sm:$0xff]
    %v1501 = vld [vmem:[#allocation8 + $0x1f8] sm:$0xff]
    %v1502 = vld [vmem:[#allocation8 + $0x200] sm:$0xff]
    %v1503 = vld [vmem:[#allocation8 + $0x208] sm:$0xff]
    %v1504 = vld [vmem:[#allocation8 + $0x210] sm:$0xff]
    %v1505 = vld [vmem:[#allocation8 + $0x218] sm:$0xff]
    %v1506 = vld [vmem:[#allocation8 + $0x220] sm:$0xff]
    %v1507 = vld [vmem:[#allocation8 + $0x228] sm:$0xff]
    %v1508 = vld [vmem:[#allocation8 + $0x230] sm:$0xff]
    %v1509 = vld [vmem:[#allocation8 + $0x238] sm:$0xff]
    %v1510 = vld [vmem:[#allocation8 + $0x240] sm:$0xff]
    %v1511 = vld [vmem:[#allocation8 + $0x248] sm:$0xff]
    %v1512 = vld [vmem:[#allocation8 + $0x250] sm:$0xff]
    %v1513 = vld [vmem:[#allocation8 + $0x258] sm:$0xff]
    %v1514 = vld [vmem:[#allocation8 + $0x260] sm:$0xff]
    %v1515 = vld [vmem:[#allocation8 + $0x268] sm:$0xff]
    %v1516 = vld [vmem:[#allocation8 + $0x270] sm:$0xff]
    %v1517 = vld [vmem:[#allocation8 + $0x278] sm:$0xff]
    %v1518 = vld [vmem:[#allocation8 + $0x280] sm:$0xff]
    %v1519 = vld [vmem:[#allocation8 + $0x288] sm:$0xff]
    %v1520 = vld [vmem:[#allocation8 + $0x290] sm:$0xff]
    %v1521 = vld [vmem:[#allocation8 + $0x298] sm:$0xff]
    %v1522 = vld [vmem:[#allocation8 + $0x2a0] sm:$0xff]
    %v1523 = vld [vmem:[#allocation8 + $0x2a8] sm:$0xff]
    %v1524 = vld [vmem:[#allocation8 + $0x2b0] sm:$0xff]
    %v1525 = vld [vmem:[#allocation8 + $0x2b8] sm:$0xff]
    %v1526 = vld [vmem:[#allocation8 + $0x2c0] sm:$0xff]
    %v1527 = vld [vmem:[#allocation8 + $0x2c8] sm:$0xff]
    %v1528 = vld [vmem:[#allocation8 + $0x2d0] sm:$0xff]
    %v1529 = vld [vmem:[#allocation8 + $0x2d8] sm:$0xff]
    %v1530 = vld [vmem:[#allocation8 + $0x2e0] sm:$0xff]
    %v1531 = vld [vmem:[#allocation8 + $0x2e8] sm:$0xff]
    %v1532 = vld [vmem:[#allocation8 + $0x2f0] sm:$0xff]
    %v1533 = vld [vmem:[#allocation8 + $0x2f8] sm:$0xff]
    %v1534 = vld [vmem:[#allocation8 + $0x300] sm:$0xff]
    %v1535 = vld [vmem:[#allocation8 + $0x308] sm:$0xff]
    %v1536 = vld [vmem:[#allocation8 + $0x310] sm:$0xff]
    %v1537 = vld [vmem:[#allocation8 + $0x318] sm:$0xff]
    %v1538 = vld [vmem:[#allocation8 + $0x320] sm:$0xff]
    %v1539 = vld [vmem:[#allocation8 + $0x328] sm:$0xff]
    %v1540 = vld [vmem:[#allocation8 + $0x330] sm:$0xff]
    %v1541 = vld [vmem:[#allocation8 + $0x338] sm:$0xff]
    %v1542 = vld [vmem:[#allocation8 + $0x340] sm:$0xff]
    %v1543 = vld [vmem:[#allocation8 + $0x348] sm:$0xff]
    %v1544 = vld [vmem:[#allocation8 + $0x350] sm:$0xff]
    %v1545 = vld [vmem:[#allocation8 + $0x358] sm:$0xff]
    %v1546 = vld [vmem:[#allocation8 + $0x360] sm:$0xff]
    %v1547 = vld [vmem:[#allocation8 + $0x368] sm:$0xff]
    %v1548 = vld [vmem:[#allocation8 + $0x370] sm:$0xff]
    %v1549 = vld [vmem:[#allocation8 + $0x378] sm:$0xff]
    %v1550 = vld [vmem:[#allocation8 + $0x380] sm:$0xff]
    %v1551 = vld [vmem:[#allocation8 + $0x388] sm:$0xff]
    %v1552 = vld [vmem:[#allocation8 + $0x390] sm:$0xff]
    %v1553 = vld [vmem:[#allocation8 + $0x398] sm:$0xff]
    %v1554 = vld [vmem:[#allocation8 + $0x3a0] sm:$0xff]
    %v1555 = vld [vmem:[#allocation8 + $0x3a8] sm:$0xff]
    %v1556 = vld [vmem:[#allocation8 + $0x3b0] sm:$0xff]
    %v1557 = vld [vmem:[#allocation8 + $0x3b8] sm:$0xff]
    %v1558 = vld [vmem:[#allocation8 + $0x3c0] sm:$0xff]
    %v1559 = vld [vmem:[#allocation8 + $0x3c8] sm:$0xff]
    %v1560 = vld [vmem:[#allocation8 + $0x3d0] sm:$0xff]
    %v1561 = vld [vmem:[#allocation8 + $0x3d8] sm:$0xff]
    %v1562 = vld [vmem:[#allocation8 + $0x3e0] sm:$0xff]
    %v1563 = vld [vmem:[#allocation8 + $0x3e8] sm:$0xff]
    %v1564 = vld [vmem:[#allocation8 + $0x3f0] sm:$0xff]
    %v1565 = vld [vmem:[#allocation8 + $0x3f8] sm:$0xff]
    %v1566 = vld [vmem:[#allocation8 + $0x400] sm:$0xff]
    %v1567 = vld [vmem:[#allocation8 + $0x408] sm:$0xff]
    %v1568 = vld [vmem:[#allocation8 + $0x410] sm:$0xff]
    %v1569 = vld [vmem:[#allocation8 + $0x418] sm:$0xff]
    %v1570 = vld [vmem:[#allocation8 + $0x420] sm:$0xff]
    %v1571 = vld [vmem:[#allocation8 + $0x428] sm:$0xff]
    %v1572 = vld [vmem:[#allocation8 + $0x430] sm:$0xff]
    %v1573 = vld [vmem:[#allocation8 + $0x438] sm:$0xff]
    %v1574 = vld [vmem:[#allocation8 + $0x440] sm:$0xff]
    %v1575 = vld [vmem:[#allocation8 + $0x448] sm:$0xff]
    %v1576 = vld [vmem:[#allocation8 + $0x450] sm:$0xff]
    %v1577 = vld [vmem:[#allocation8 + $0x458] sm:$0xff]
    %v1578 = vld [vmem:[#allocation8 + $0x460] sm:$0xff]
    %v1579 = vld [vmem:[#allocation8 + $0x468] sm:$0xff]
    %v1580 = vld [vmem:[#allocation8 + $0x470] sm:$0xff]
    %v1581 = vld [vmem:[#allocation8 + $0x478] sm:$0xff]
    %v1582 = vld [vmem:[#allocation8 + $0x480] sm:$0xff]
    %v1583 = vld [vmem:[#allocation8 + $0x488] sm:$0xff]
    %v1584 = vld [vmem:[#allocation8 + $0x490] sm:$0xff]
    %v1585 = vld [vmem:[#allocation8 + $0x498] sm:$0xff]
    %v1586 = vld [vmem:[#allocation8 + $0x4a0] sm:$0xff]
    %v1587 = vld [vmem:[#allocation8 + $0x4a8] sm:$0xff]
    %v1588 = vld [vmem:[#allocation8 + $0x4b0] sm:$0xff]
    %v1589 = vld [vmem:[#allocation8 + $0x4b8] sm:$0xff]
    %v1590 = vld [vmem:[#allocation8 + $0x4c0] sm:$0xff]
    %v1591 = vld [vmem:[#allocation8 + $0x4c8] sm:$0xff]
    %v1592 = vld [vmem:[#allocation8 + $0x4d0] sm:$0xff]
    %v1593 = vld [vmem:[#allocation8 + $0x4d8] sm:$0xff]
    %v1594 = vld [vmem:[#allocation8 + $0x4e0] sm:$0xff]
    %v1595 = vld [vmem:[#allocation8 + $0x4e8] sm:$0xff]
    %v1596 = vld [vmem:[#allocation8 + $0x4f0] sm:$0xff]
    %v1597 = vld [vmem:[#allocation8 + $0x4f8] sm:$0xff]
    %v1598 = vld [vmem:[#allocation8 + $0x500] sm:$0xff]
    %v1599 = vld [vmem:[#allocation8 + $0x508] sm:$0xff]
    %v1600 = vld [vmem:[#allocation8 + $0x510] sm:$0xff]
    %v1601 = vld [vmem:[#allocation8 + $0x518] sm:$0xff]
    %v1602 = vld [vmem:[#allocation8 + $0x520] sm:$0xff]
    %v1603 = vld [vmem:[#allocation8 + $0x528] sm:$0xff]
    %v1604 = vld [vmem:[#allocation8 + $0x530] sm:$0xff]
    %v1605 = vld [vmem:[#allocation8 + $0x538] sm:$0xff]
    %v1606 = vld [vmem:[#allocation8 + $0x540] sm:$0xff]
    %v1607 = vld [vmem:[#allocation8 + $0x548] sm:$0xff]
    %v1608 = vld [vmem:[#allocation8 + $0x550] sm:$0xff]
    %v1609 = vld [vmem:[#allocation8 + $0x558] sm:$0xff]
    %v1610 = vld [vmem:[#allocation8 + $0x560] sm:$0xff]
    %v1611 = vld [vmem:[#allocation8 + $0x568] sm:$0xff]
    %v1612 = vld [vmem:[#allocation8 + $0x570] sm:$0xff]
    %v1613 = vld [vmem:[#allocation8 + $0x578] sm:$0xff]
    %v1614 = vld [vmem:[#allocation8 + $0x580] sm:$0xff]
    %v1615 = vld [vmem:[#allocation8 + $0x588] sm:$0xff]
    %v1616 = vld [vmem:[#allocation8 + $0x590] sm:$0xff]
    %v1617 = vld [vmem:[#allocation8 + $0x598] sm:$0xff]
    %v1618 = vld [vmem:[#allocation8 + $0x5a0] sm:$0xff]
    %v1619 = vld [vmem:[#allocation8 + $0x5a8] sm:$0xff]
    %v1620 = vld [vmem:[#allocation8 + $0x5b0] sm:$0xff]
    %v1621 = vld [vmem:[#allocation8 + $0x5b8] sm:$0xff]
    %v1622 = vld [vmem:[#allocation8 + $0x5c0] sm:$0xff]
    %v1623 = vld [vmem:[#allocation8 + $0x5c8] sm:$0xff]
    %v1624 = vld [vmem:[#allocation8 + $0x5d0] sm:$0xff]
    %v1625 = vld [vmem:[#allocation8 + $0x5d8] sm:$0xff]
    %v1626 = vld [vmem:[#allocation8 + $0x5e0] sm:$0xff]
    %v1627 = vld [vmem:[#allocation8 + $0x5e8] sm:$0xff]
    %v1628 = vld [vmem:[#allocation8 + $0x5f0] sm:$0xff]
    %v1629 = vld [vmem:[#allocation8 + $0x5f8] sm:$0xff]
    %v1630 = vld [vmem:[#allocation8 + $0x600] sm:$0xff]
    %v1631 = vld [vmem:[#allocation8 + $0x608] sm:$0xff]
    %v1632 = vld [vmem:[#allocation8 + $0x610] sm:$0xff]
    %v1633 = vld [vmem:[#allocation8 + $0x618] sm:$0xff]
    %v1634 = vld [vmem:[#allocation8 + $0x620] sm:$0xff]
    %v1635 = vld [vmem:[#allocation8 + $0x628] sm:$0xff]
    %v1636 = vld [vmem:[#allocation8 + $0x630] sm:$0xff]
    %v1637 = vld [vmem:[#allocation8 + $0x638] sm:$0xff]
    %v1638 = vld [vmem:[#allocation8 + $0x640] sm:$0xff]
    %v1639 = vld [vmem:[#allocation8 + $0x648] sm:$0xff]
    %v1640 = vld [vmem:[#allocation8 + $0x650] sm:$0xff]
    %v1641 = vld [vmem:[#allocation8 + $0x658] sm:$0xff]
    %v1642 = vld [vmem:[#allocation8 + $0x660] sm:$0xff]
    %v1643 = vld [vmem:[#allocation8 + $0x668] sm:$0xff]
    %v1644 = vld [vmem:[#allocation8 + $0x670] sm:$0xff]
    %v1645 = vld [vmem:[#allocation8 + $0x678] sm:$0xff]
    %v1646 = vld [vmem:[#allocation8 + $0x680] sm:$0xff]
    %v1647 = vld [vmem:[#allocation8 + $0x688] sm:$0xff]
    %v1648 = vld [vmem:[#allocation8 + $0x690] sm:$0xff]
    %v1649 = vld [vmem:[#allocation8 + $0x698] sm:$0xff]
    %v1650 = vld [vmem:[#allocation8 + $0x6a0] sm:$0xff]
    %v1651 = vld [vmem:[#allocation8 + $0x6a8] sm:$0xff]
    %v1652 = vld [vmem:[#allocation8 + $0x6b0] sm:$0xff]
    %v1653 = vld [vmem:[#allocation8 + $0x6b8] sm:$0xff]
    %v1654 = vld [vmem:[#allocation8 + $0x6c0] sm:$0xff]
    %v1655 = vld [vmem:[#allocation8 + $0x6c8] sm:$0xff]
    %v1656 = vld [vmem:[#allocation8 + $0x6d0] sm:$0xff]
    %v1657 = vld [vmem:[#allocation8 + $0x6d8] sm:$0xff]
    %v1658 = vld [vmem:[#allocation8 + $0x6e0] sm:$0xff]
    %v1659 = vld [vmem:[#allocation8 + $0x6e8] sm:$0xff]
    %v1660 = vld [vmem:[#allocation8 + $0x6f0] sm:$0xff]
    %v1661 = vld [vmem:[#allocation8 + $0x6f8] sm:$0xff]
    %v1662 = vld [vmem:[#allocation8 + $0x700] sm:$0xff]
    %v1663 = vld [vmem:[#allocation8 + $0x708] sm:$0xff]
    %v1664 = vld [vmem:[#allocation8 + $0x710] sm:$0xff]
    %v1665 = vld [vmem:[#allocation8 + $0x718] sm:$0xff]
    %v1666 = vld [vmem:[#allocation8 + $0x720] sm:$0xff]
    %v1667 = vld [vmem:[#allocation8 + $0x728] sm:$0xff]
    %v1668 = vld [vmem:[#allocation8 + $0x730] sm:$0xff]
    %v1669 = vld [vmem:[#allocation8 + $0x738] sm:$0xff]
    %v1670 = vld [vmem:[#allocation8 + $0x740] sm:$0xff]
    %v1671 = vld [vmem:[#allocation8 + $0x748] sm:$0xff]
    %v1672 = vld [vmem:[#allocation8 + $0x750] sm:$0xff]
    %v1673 = vld [vmem:[#allocation8 + $0x758] sm:$0xff]
    %v1674 = vld [vmem:[#allocation8 + $0x760] sm:$0xff]
    %v1675 = vld [vmem:[#allocation8 + $0x768] sm:$0xff]
    %v1676 = vld [vmem:[#allocation8 + $0x770] sm:$0xff]
    %v1677 = vld [vmem:[#allocation8 + $0x778] sm:$0xff]
    %v1678 = vld [vmem:[#allocation8 + $0x780] sm:$0xff]
    %v1679 = vld [vmem:[#allocation8 + $0x788] sm:$0xff]
    %v1680 = vld [vmem:[#allocation8 + $0x790] sm:$0xff]
    %v1681 = vld [vmem:[#allocation8 + $0x798] sm:$0xff]
    %v1682 = vld [vmem:[#allocation8 + $0x7a0] sm:$0xff]
    %v1683 = vld [vmem:[#allocation8 + $0x7a8] sm:$0xff]
    %v1684 = vld [vmem:[#allocation8 + $0x7b0] sm:$0xff]
    %v1685 = vld [vmem:[#allocation8 + $0x7b8] sm:$0xff]
    %v1686 = vld [vmem:[#allocation8 + $0x7c0] sm:$0xff]
    %v1687 = vld [vmem:[#allocation8 + $0x7c8] sm:$0xff]
    %v1688 = vld [vmem:[#allocation8 + $0x7d0] sm:$0xff]
    %v1689 = vld [vmem:[#allocation8 + $0x7d8] sm:$0xff]
    %v1690 = vld [vmem:[#allocation8 + $0x7e0] sm:$0xff]
    %v1691 = vld [vmem:[#allocation8 + $0x7e8] sm:$0xff]
    %v1692 = vld [vmem:[#allocation8 + $0x7f0] sm:$0xff]
    %v1693 = vld [vmem:[#allocation8 + $0x7f8] sm:$0xff]
    %v1695 = vlaneseq
    %v1696 = vshrl.u32 %v1695, 7
    %v1697 = vsub.s32 0, %v1696
    %v1698 = vrot.slane %v1437, %v1697
    %v1699 = vlaneseq
    %v1700 = vshrl.u32 %v1699, 7
    %v1701 = vsub.s32 4, %v1700
    %v1702 = vrot.slane %v1437, %v1701
    %v1705 = vlaneseq
    %v1706 = vshrl.u32 %v1705, 7
    %v1707 = vsub.s32 0, %v1706
    %v1708 = vrot.slane %v1698, %v1707
    %v1709 = vlaneseq
    %v1710 = vshrl.u32 %v1709, 7
    %v1711 = vsub.s32 0, %v1710
    %v1712 = vrot.slane %v1702, %v1711
    %v1969 = vunpack.c.l.b16 %v1438
    %v1970 = vunpack.c.h.b16 %v1438
    %v1971 = vunpack.c.l.b16 %v1439
    %v1972 = vunpack.c.h.b16 %v1439
    %v1973 = vunpack.c.l.b16 %v1440
    %v1974 = vunpack.c.h.b16 %v1440
    %v1975 = vunpack.c.l.b16 %v1441
    %v1976 = vunpack.c.h.b16 %v1441
    %v1977 = vunpack.c.l.b16 %v1442
    %v1978 = vunpack.c.h.b16 %v1442
    %v1979 = vunpack.c.l.b16 %v1443
    %v1980 = vunpack.c.h.b16 %v1443
    %v1981 = vunpack.c.l.b16 %v1444
    %v1982 = vunpack.c.h.b16 %v1444
    %v1983 = vunpack.c.l.b16 %v1445
    %v1984 = vunpack.c.h.b16 %v1445
    %v1985 = vunpack.c.l.b16 %v1446
    %v1986 = vunpack.c.h.b16 %v1446
    %v1987 = vunpack.c.l.b16 %v1447
    %v1988 = vunpack.c.h.b16 %v1447
    %v1989 = vunpack.c.l.b16 %v1448
    %v1990 = vunpack.c.h.b16 %v1448
    %v1991 = vunpack.c.l.b16 %v1449
    %v1992 = vunpack.c.h.b16 %v1449
    %v1993 = vunpack.c.l.b16 %v1450
    %v1994 = vunpack.c.h.b16 %v1450
    %v1995 = vunpack.c.l.b16 %v1451
    %v1996 = vunpack.c.h.b16 %v1451
    %v1997 = vunpack.c.l.b16 %v1452
    %v1998 = vunpack.c.h.b16 %v1452
    %v1999 = vunpack.c.l.b16 %v1453
    %v2000 = vunpack.c.h.b16 %v1453
    %v2001 = vunpack.c.l.b16 %v1454
    %v2002 = vunpack.c.h.b16 %v1454
    %v2003 = vunpack.c.l.b16 %v1455
    %v2004 = vunpack.c.h.b16 %v1455
    %v2005 = vunpack.c.l.b16 %v1456
    %v2006 = vunpack.c.h.b16 %v1456
    %v2007 = vunpack.c.l.b16 %v1457
    %v2008 = vunpack.c.h.b16 %v1457
    %v2009 = vunpack.c.l.b16 %v1458
    %v2010 = vunpack.c.h.b16 %v1458
    %v2011 = vunpack.c.l.b16 %v1459
    %v2012 = vunpack.c.h.b16 %v1459
    %v2013 = vunpack.c.l.b16 %v1460
    %v2014 = vunpack.c.h.b16 %v1460
    %v2015 = vunpack.c.l.b16 %v1461
    %v2016 = vunpack.c.h.b16 %v1461
    %v2017 = vunpack.c.l.b16 %v1462
    %v2018 = vunpack.c.h.b16 %v1462
    %v2019 = vunpack.c.l.b16 %v1463
    %v2020 = vunpack.c.h.b16 %v1463
    %v2021 = vunpack.c.l.b16 %v1464
    %v2022 = vunpack.c.h.b16 %v1464
    %v2023 = vunpack.c.l.b16 %v1465
    %v2024 = vunpack.c.h.b16 %v1465
    %v2025 = vunpack.c.l.b16 %v1466
    %v2026 = vunpack.c.h.b16 %v1466
    %v2027 = vunpack.c.l.b16 %v1467
    %v2028 = vunpack.c.h.b16 %v1467
    %v2029 = vunpack.c.l.b16 %v1468
    %v2030 = vunpack.c.h.b16 %v1468
    %v2031 = vunpack.c.l.b16 %v1469
    %v2032 = vunpack.c.h.b16 %v1469
    %v2033 = vunpack.c.l.b16 %v1470
    %v2034 = vunpack.c.h.b16 %v1470
    %v2035 = vunpack.c.l.b16 %v1471
    %v2036 = vunpack.c.h.b16 %v1471
    %v2037 = vunpack.c.l.b16 %v1472
    %v2038 = vunpack.c.h.b16 %v1472
    %v2039 = vunpack.c.l.b16 %v1473
    %v2040 = vunpack.c.h.b16 %v1473
    %v2041 = vunpack.c.l.b16 %v1474
    %v2042 = vunpack.c.h.b16 %v1474
    %v2043 = vunpack.c.l.b16 %v1475
    %v2044 = vunpack.c.h.b16 %v1475
    %v2045 = vunpack.c.l.b16 %v1476
    %v2046 = vunpack.c.h.b16 %v1476
    %v2047 = vunpack.c.l.b16 %v1477
    %v2048 = vunpack.c.h.b16 %v1477
    %v2049 = vunpack.c.l.b16 %v1478
    %v2050 = vunpack.c.h.b16 %v1478
    %v2051 = vunpack.c.l.b16 %v1479
    %v2052 = vunpack.c.h.b16 %v1479
    %v2053 = vunpack.c.l.b16 %v1480
    %v2054 = vunpack.c.h.b16 %v1480
    %v2055 = vunpack.c.l.b16 %v1481
    %v2056 = vunpack.c.h.b16 %v1481
    %v2057 = vunpack.c.l.b16 %v1482
    %v2058 = vunpack.c.h.b16 %v1482
    %v2059 = vunpack.c.l.b16 %v1483
    %v2060 = vunpack.c.h.b16 %v1483
    %v2061 = vunpack.c.l.b16 %v1484
    %v2062 = vunpack.c.h.b16 %v1484
    %v2063 = vunpack.c.l.b16 %v1485
    %v2064 = vunpack.c.h.b16 %v1485
    %v2065 = vunpack.c.l.b16 %v1486
    %v2066 = vunpack.c.h.b16 %v1486
    %v2067 = vunpack.c.l.b16 %v1487
    %v2068 = vunpack.c.h.b16 %v1487
    %v2069 = vunpack.c.l.b16 %v1488
    %v2070 = vunpack.c.h.b16 %v1488
    %v2071 = vunpack.c.l.b16 %v1489
    %v2072 = vunpack.c.h.b16 %v1489
    %v2073 = vunpack.c.l.b16 %v1490
    %v2074 = vunpack.c.h.b16 %v1490
    %v2075 = vunpack.c.l.b16 %v1491
    %v2076 = vunpack.c.h.b16 %v1491
    %v2077 = vunpack.c.l.b16 %v1492
    %v2078 = vunpack.c.h.b16 %v1492
    %v2079 = vunpack.c.l.b16 %v1493
    %v2080 = vunpack.c.h.b16 %v1493
    %v2081 = vunpack.c.l.b16 %v1494
    %v2082 = vunpack.c.h.b16 %v1494
    %v2083 = vunpack.c.l.b16 %v1495
    %v2084 = vunpack.c.h.b16 %v1495
    %v2085 = vunpack.c.l.b16 %v1496
    %v2086 = vunpack.c.h.b16 %v1496
    %v2087 = vunpack.c.l.b16 %v1497
    %v2088 = vunpack.c.h.b16 %v1497
    %v2089 = vunpack.c.l.b16 %v1498
    %v2090 = vunpack.c.h.b16 %v1498
    %v2091 = vunpack.c.l.b16 %v1499
    %v2092 = vunpack.c.h.b16 %v1499
    %v2093 = vunpack.c.l.b16 %v1500
    %v2094 = vunpack.c.h.b16 %v1500
    %v2095 = vunpack.c.l.b16 %v1501
    %v2096 = vunpack.c.h.b16 %v1501
    %v2097 = vunpack.c.l.b16 %v1502
    %v2098 = vunpack.c.h.b16 %v1502
    %v2099 = vunpack.c.l.b16 %v1503
    %v2100 = vunpack.c.h.b16 %v1503
    %v2101 = vunpack.c.l.b16 %v1504
    %v2102 = vunpack.c.h.b16 %v1504
    %v2103 = vunpack.c.l.b16 %v1505
    %v2104 = vunpack.c.h.b16 %v1505
    %v2105 = vunpack.c.l.b16 %v1506
    %v2106 = vunpack.c.h.b16 %v1506
    %v2107 = vunpack.c.l.b16 %v1507
    %v2108 = vunpack.c.h.b16 %v1507
    %v2109 = vunpack.c.l.b16 %v1508
    %v2110 = vunpack.c.h.b16 %v1508
    %v2111 = vunpack.c.l.b16 %v1509
    %v2112 = vunpack.c.h.b16 %v1509
    %v2113 = vunpack.c.l.b16 %v1510
    %v2114 = vunpack.c.h.b16 %v1510
    %v2115 = vunpack.c.l.b16 %v1511
    %v2116 = vunpack.c.h.b16 %v1511
    %v2117 = vunpack.c.l.b16 %v1512
    %v2118 = vunpack.c.h.b16 %v1512
    %v2119 = vunpack.c.l.b16 %v1513
    %v2120 = vunpack.c.h.b16 %v1513
    %v2121 = vunpack.c.l.b16 %v1514
    %v2122 = vunpack.c.h.b16 %v1514
    %v2123 = vunpack.c.l.b16 %v1515
    %v2124 = vunpack.c.h.b16 %v1515
    %v2125 = vunpack.c.l.b16 %v1516
    %v2126 = vunpack.c.h.b16 %v1516
    %v2127 = vunpack.c.l.b16 %v1517
    %v2128 = vunpack.c.h.b16 %v1517
    %v2129 = vunpack.c.l.b16 %v1518
    %v2130 = vunpack.c.h.b16 %v1518
    %v2131 = vunpack.c.l.b16 %v1519
    %v2132 = vunpack.c.h.b16 %v1519
    %v2133 = vunpack.c.l.b16 %v1520
    %v2134 = vunpack.c.h.b16 %v1520
    %v2135 = vunpack.c.l.b16 %v1521
    %v2136 = vunpack.c.h.b16 %v1521
    %v2137 = vunpack.c.l.b16 %v1522
    %v2138 = vunpack.c.h.b16 %v1522
    %v2139 = vunpack.c.l.b16 %v1523
    %v2140 = vunpack.c.h.b16 %v1523
    %v2141 = vunpack.c.l.b16 %v1524
    %v2142 = vunpack.c.h.b16 %v1524
    %v2143 = vunpack.c.l.b16 %v1525
    %v2144 = vunpack.c.h.b16 %v1525
    %v2145 = vunpack.c.l.b16 %v1526
    %v2146 = vunpack.c.h.b16 %v1526
    %v2147 = vunpack.c.l.b16 %v1527
    %v2148 = vunpack.c.h.b16 %v1527
    %v2149 = vunpack.c.l.b16 %v1528
    %v2150 = vunpack.c.h.b16 %v1528
    %v2151 = vunpack.c.l.b16 %v1529
    %v2152 = vunpack.c.h.b16 %v1529
    %v2153 = vunpack.c.l.b16 %v1530
    %v2154 = vunpack.c.h.b16 %v1530
    %v2155 = vunpack.c.l.b16 %v1531
    %v2156 = vunpack.c.h.b16 %v1531
    %v2157 = vunpack.c.l.b16 %v1532
    %v2158 = vunpack.c.h.b16 %v1532
    %v2159 = vunpack.c.l.b16 %v1533
    %v2160 = vunpack.c.h.b16 %v1533
    %v2161 = vunpack.c.l.b16 %v1534
    %v2162 = vunpack.c.h.b16 %v1534
    %v2163 = vunpack.c.l.b16 %v1535
    %v2164 = vunpack.c.h.b16 %v1535
    %v2165 = vunpack.c.l.b16 %v1536
    %v2166 = vunpack.c.h.b16 %v1536
    %v2167 = vunpack.c.l.b16 %v1537
    %v2168 = vunpack.c.h.b16 %v1537
    %v2169 = vunpack.c.l.b16 %v1538
    %v2170 = vunpack.c.h.b16 %v1538
    %v2171 = vunpack.c.l.b16 %v1539
    %v2172 = vunpack.c.h.b16 %v1539
    %v2173 = vunpack.c.l.b16 %v1540
    %v2174 = vunpack.c.h.b16 %v1540
    %v2175 = vunpack.c.l.b16 %v1541
    %v2176 = vunpack.c.h.b16 %v1541
    %v2177 = vunpack.c.l.b16 %v1542
    %v2178 = vunpack.c.h.b16 %v1542
    %v2179 = vunpack.c.l.b16 %v1543
    %v2180 = vunpack.c.h.b16 %v1543
    %v2181 = vunpack.c.l.b16 %v1544
    %v2182 = vunpack.c.h.b16 %v1544
    %v2183 = vunpack.c.l.b16 %v1545
    %v2184 = vunpack.c.h.b16 %v1545
    %v2185 = vunpack.c.l.b16 %v1546
    %v2186 = vunpack.c.h.b16 %v1546
    %v2187 = vunpack.c.l.b16 %v1547
    %v2188 = vunpack.c.h.b16 %v1547
    %v2189 = vunpack.c.l.b16 %v1548
    %v2190 = vunpack.c.h.b16 %v1548
    %v2191 = vunpack.c.l.b16 %v1549
    %v2192 = vunpack.c.h.b16 %v1549
    %v2193 = vunpack.c.l.b16 %v1550
    %v2194 = vunpack.c.h.b16 %v1550
    %v2195 = vunpack.c.l.b16 %v1551
    %v2196 = vunpack.c.h.b16 %v1551
    %v2197 = vunpack.c.l.b16 %v1552
    %v2198 = vunpack.c.h.b16 %v1552
    %v2199 = vunpack.c.l.b16 %v1553
    %v2200 = vunpack.c.h.b16 %v1553
    %v2201 = vunpack.c.l.b16 %v1554
    %v2202 = vunpack.c.h.b16 %v1554
    %v2203 = vunpack.c.l.b16 %v1555
    %v2204 = vunpack.c.h.b16 %v1555
    %v2205 = vunpack.c.l.b16 %v1556
    %v2206 = vunpack.c.h.b16 %v1556
    %v2207 = vunpack.c.l.b16 %v1557
    %v2208 = vunpack.c.h.b16 %v1557
    %v2209 = vunpack.c.l.b16 %v1558
    %v2210 = vunpack.c.h.b16 %v1558
    %v2211 = vunpack.c.l.b16 %v1559
    %v2212 = vunpack.c.h.b16 %v1559
    %v2213 = vunpack.c.l.b16 %v1560
    %v2214 = vunpack.c.h.b16 %v1560
    %v2215 = vunpack.c.l.b16 %v1561
    %v2216 = vunpack.c.h.b16 %v1561
    %v2217 = vunpack.c.l.b16 %v1562
    %v2218 = vunpack.c.h.b16 %v1562
    %v2219 = vunpack.c.l.b16 %v1563
    %v2220 = vunpack.c.h.b16 %v1563
    %v2221 = vunpack.c.l.b16 %v1564
    %v2222 = vunpack.c.h.b16 %v1564
    %v2223 = vunpack.c.l.b16 %v1565
    %v2224 = vunpack.c.h.b16 %v1565
    %v2225 = vunpack.c.l.b16 %v1566
    %v2226 = vunpack.c.h.b16 %v1566
    %v2227 = vunpack.c.l.b16 %v1567
    %v2228 = vunpack.c.h.b16 %v1567
    %v2229 = vunpack.c.l.b16 %v1568
    %v2230 = vunpack.c.h.b16 %v1568
    %v2231 = vunpack.c.l.b16 %v1569
    %v2232 = vunpack.c.h.b16 %v1569
    %v2233 = vunpack.c.l.b16 %v1570
    %v2234 = vunpack.c.h.b16 %v1570
    %v2235 = vunpack.c.l.b16 %v1571
    %v2236 = vunpack.c.h.b16 %v1571
    %v2237 = vunpack.c.l.b16 %v1572
    %v2238 = vunpack.c.h.b16 %v1572
    %v2239 = vunpack.c.l.b16 %v1573
    %v2240 = vunpack.c.h.b16 %v1573
    %v2241 = vunpack.c.l.b16 %v1574
    %v2242 = vunpack.c.h.b16 %v1574
    %v2243 = vunpack.c.l.b16 %v1575
    %v2244 = vunpack.c.h.b16 %v1575
    %v2245 = vunpack.c.l.b16 %v1576
    %v2246 = vunpack.c.h.b16 %v1576
    %v2247 = vunpack.c.l.b16 %v1577
    %v2248 = vunpack.c.h.b16 %v1577
    %v2249 = vunpack.c.l.b16 %v1578
    %v2250 = vunpack.c.h.b16 %v1578
    %v2251 = vunpack.c.l.b16 %v1579
    %v2252 = vunpack.c.h.b16 %v1579
    %v2253 = vunpack.c.l.b16 %v1580
    %v2254 = vunpack.c.h.b16 %v1580
    %v2255 = vunpack.c.l.b16 %v1581
    %v2256 = vunpack.c.h.b16 %v1581
    %v2257 = vunpack.c.l.b16 %v1582
    %v2258 = vunpack.c.h.b16 %v1582
    %v2259 = vunpack.c.l.b16 %v1583
    %v2260 = vunpack.c.h.b16 %v1583
    %v2261 = vunpack.c.l.b16 %v1584
    %v2262 = vunpack.c.h.b16 %v1584
    %v2263 = vunpack.c.l.b16 %v1585
    %v2264 = vunpack.c.h.b16 %v1585
    %v2265 = vunpack.c.l.b16 %v1586
    %v2266 = vunpack.c.h.b16 %v1586
    %v2267 = vunpack.c.l.b16 %v1587
    %v2268 = vunpack.c.h.b16 %v1587
    %v2269 = vunpack.c.l.b16 %v1588
    %v2270 = vunpack.c.h.b16 %v1588
    %v2271 = vunpack.c.l.b16 %v1589
    %v2272 = vunpack.c.h.b16 %v1589
    %v2273 = vunpack.c.l.b16 %v1590
    %v2274 = vunpack.c.h.b16 %v1590
    %v2275 = vunpack.c.l.b16 %v1591
    %v2276 = vunpack.c.h.b16 %v1591
    %v2277 = vunpack.c.l.b16 %v1592
    %v2278 = vunpack.c.h.b16 %v1592
    %v2279 = vunpack.c.l.b16 %v1593
    %v2280 = vunpack.c.h.b16 %v1593
    %v2281 = vunpack.c.l.b16 %v1594
    %v2282 = vunpack.c.h.b16 %v1594
    %v2283 = vunpack.c.l.b16 %v1595
    %v2284 = vunpack.c.h.b16 %v1595
    %v2285 = vunpack.c.l.b16 %v1596
    %v2286 = vunpack.c.h.b16 %v1596
    %v2287 = vunpack.c.l.b16 %v1597
    %v2288 = vunpack.c.h.b16 %v1597
    %v2289 = vunpack.c.l.b16 %v1598
    %v2290 = vunpack.c.h.b16 %v1598
    %v2291 = vunpack.c.l.b16 %v1599
    %v2292 = vunpack.c.h.b16 %v1599
    %v2293 = vunpack.c.l.b16 %v1600
    %v2294 = vunpack.c.h.b16 %v1600
    %v2295 = vunpack.c.l.b16 %v1601
    %v2296 = vunpack.c.h.b16 %v1601
    %v2297 = vunpack.c.l.b16 %v1602
    %v2298 = vunpack.c.h.b16 %v1602
    %v2299 = vunpack.c.l.b16 %v1603
    %v2300 = vunpack.c.h.b16 %v1603
    %v2301 = vunpack.c.l.b16 %v1604
    %v2302 = vunpack.c.h.b16 %v1604
    %v2303 = vunpack.c.l.b16 %v1605
    %v2304 = vunpack.c.h.b16 %v1605
    %v2305 = vunpack.c.l.b16 %v1606
    %v2306 = vunpack.c.h.b16 %v1606
    %v2307 = vunpack.c.l.b16 %v1607
    %v2308 = vunpack.c.h.b16 %v1607
    %v2309 = vunpack.c.l.b16 %v1608
    %v2310 = vunpack.c.h.b16 %v1608
    %v2311 = vunpack.c.l.b16 %v1609
    %v2312 = vunpack.c.h.b16 %v1609
    %v2313 = vunpack.c.l.b16 %v1610
    %v2314 = vunpack.c.h.b16 %v1610
    %v2315 = vunpack.c.l.b16 %v1611
    %v2316 = vunpack.c.h.b16 %v1611
    %v2317 = vunpack.c.l.b16 %v1612
    %v2318 = vunpack.c.h.b16 %v1612
    %v2319 = vunpack.c.l.b16 %v1613
    %v2320 = vunpack.c.h.b16 %v1613
    %v2321 = vunpack.c.l.b16 %v1614
    %v2322 = vunpack.c.h.b16 %v1614
    %v2323 = vunpack.c.l.b16 %v1615
    %v2324 = vunpack.c.h.b16 %v1615
    %v2325 = vunpack.c.l.b16 %v1616
    %v2326 = vunpack.c.h.b16 %v1616
    %v2327 = vunpack.c.l.b16 %v1617
    %v2328 = vunpack.c.h.b16 %v1617
    %v2329 = vunpack.c.l.b16 %v1618
    %v2330 = vunpack.c.h.b16 %v1618
    %v2331 = vunpack.c.l.b16 %v1619
    %v2332 = vunpack.c.h.b16 %v1619
    %v2333 = vunpack.c.l.b16 %v1620
    %v2334 = vunpack.c.h.b16 %v1620
    %v2335 = vunpack.c.l.b16 %v1621
    %v2336 = vunpack.c.h.b16 %v1621
    %v2337 = vunpack.c.l.b16 %v1622
    %v2338 = vunpack.c.h.b16 %v1622
    %v2339 = vunpack.c.l.b16 %v1623
    %v2340 = vunpack.c.h.b16 %v1623
    %v2341 = vunpack.c.l.b16 %v1624
    %v2342 = vunpack.c.h.b16 %v1624
    %v2343 = vunpack.c.l.b16 %v1625
    %v2344 = vunpack.c.h.b16 %v1625
    %v2345 = vunpack.c.l.b16 %v1626
    %v2346 = vunpack.c.h.b16 %v1626
    %v2347 = vunpack.c.l.b16 %v1627
    %v2348 = vunpack.c.h.b16 %v1627
    %v2349 = vunpack.c.l.b16 %v1628
    %v2350 = vunpack.c.h.b16 %v1628
    %v2351 = vunpack.c.l.b16 %v1629
    %v2352 = vunpack.c.h.b16 %v1629
    %v2353 = vunpack.c.l.b16 %v1630
    %v2354 = vunpack.c.h.b16 %v1630
    %v2355 = vunpack.c.l.b16 %v1631
    %v2356 = vunpack.c.h.b16 %v1631
    %v2357 = vunpack.c.l.b16 %v1632
    %v2358 = vunpack.c.h.b16 %v1632
    %v2359 = vunpack.c.l.b16 %v1633
    %v2360 = vunpack.c.h.b16 %v1633
    %v2361 = vunpack.c.l.b16 %v1634
    %v2362 = vunpack.c.h.b16 %v1634
    %v2363 = vunpack.c.l.b16 %v1635
    %v2364 = vunpack.c.h.b16 %v1635
    %v2365 = vunpack.c.l.b16 %v1636
    %v2366 = vunpack.c.h.b16 %v1636
    %v2367 = vunpack.c.l.b16 %v1637
    %v2368 = vunpack.c.h.b16 %v1637
    %v2369 = vunpack.c.l.b16 %v1638
    %v2370 = vunpack.c.h.b16 %v1638
    %v2371 = vunpack.c.l.b16 %v1639
    %v2372 = vunpack.c.h.b16 %v1639
    %v2373 = vunpack.c.l.b16 %v1640
    %v2374 = vunpack.c.h.b16 %v1640
    %v2375 = vunpack.c.l.b16 %v1641
    %v2376 = vunpack.c.h.b16 %v1641
    %v2377 = vunpack.c.l.b16 %v1642
    %v2378 = vunpack.c.h.b16 %v1642
    %v2379 = vunpack.c.l.b16 %v1643
    %v2380 = vunpack.c.h.b16 %v1643
    %v2381 = vunpack.c.l.b16 %v1644
    %v2382 = vunpack.c.h.b16 %v1644
    %v2383 = vunpack.c.l.b16 %v1645
    %v2384 = vunpack.c.h.b16 %v1645
    %v2385 = vunpack.c.l.b16 %v1646
    %v2386 = vunpack.c.h.b16 %v1646
    %v2387 = vunpack.c.l.b16 %v1647
    %v2388 = vunpack.c.h.b16 %v1647
    %v2389 = vunpack.c.l.b16 %v1648
    %v2390 = vunpack.c.h.b16 %v1648
    %v2391 = vunpack.c.l.b16 %v1649
    %v2392 = vunpack.c.h.b16 %v1649
    %v2393 = vunpack.c.l.b16 %v1650
    %v2394 = vunpack.c.h.b16 %v1650
    %v2395 = vunpack.c.l.b16 %v1651
    %v2396 = vunpack.c.h.b16 %v1651
    %v2397 = vunpack.c.l.b16 %v1652
    %v2398 = vunpack.c.h.b16 %v1652
    %v2399 = vunpack.c.l.b16 %v1653
    %v2400 = vunpack.c.h.b16 %v1653
    %v2401 = vunpack.c.l.b16 %v1654
    %v2402 = vunpack.c.h.b16 %v1654
    %v2403 = vunpack.c.l.b16 %v1655
    %v2404 = vunpack.c.h.b16 %v1655
    %v2405 = vunpack.c.l.b16 %v1656
    %v2406 = vunpack.c.h.b16 %v1656
    %v2407 = vunpack.c.l.b16 %v1657
    %v2408 = vunpack.c.h.b16 %v1657
    %v2409 = vunpack.c.l.b16 %v1658
    %v2410 = vunpack.c.h.b16 %v1658
    %v2411 = vunpack.c.l.b16 %v1659
    %v2412 = vunpack.c.h.b16 %v1659
    %v2413 = vunpack.c.l.b16 %v1660
    %v2414 = vunpack.c.h.b16 %v1660
    %v2415 = vunpack.c.l.b16 %v1661
    %v2416 = vunpack.c.h.b16 %v1661
    %v2417 = vunpack.c.l.b16 %v1662
    %v2418 = vunpack.c.h.b16 %v1662
    %v2419 = vunpack.c.l.b16 %v1663
    %v2420 = vunpack.c.h.b16 %v1663
    %v2421 = vunpack.c.l.b16 %v1664
    %v2422 = vunpack.c.h.b16 %v1664
    %v2423 = vunpack.c.l.b16 %v1665
    %v2424 = vunpack.c.h.b16 %v1665
    %v2425 = vunpack.c.l.b16 %v1666
    %v2426 = vunpack.c.h.b16 %v1666
    %v2427 = vunpack.c.l.b16 %v1667
    %v2428 = vunpack.c.h.b16 %v1667
    %v2429 = vunpack.c.l.b16 %v1668
    %v2430 = vunpack.c.h.b16 %v1668
    %v2431 = vunpack.c.l.b16 %v1669
    %v2432 = vunpack.c.h.b16 %v1669
    %v2433 = vunpack.c.l.b16 %v1670
    %v2434 = vunpack.c.h.b16 %v1670
    %v2435 = vunpack.c.l.b16 %v1671
    %v2436 = vunpack.c.h.b16 %v1671
    %v2437 = vunpack.c.l.b16 %v1672
    %v2438 = vunpack.c.h.b16 %v1672
    %v2439 = vunpack.c.l.b16 %v1673
    %v2440 = vunpack.c.h.b16 %v1673
    %v2441 = vunpack.c.l.b16 %v1674
    %v2442 = vunpack.c.h.b16 %v1674
    %v2443 = vunpack.c.l.b16 %v1675
    %v2444 = vunpack.c.h.b16 %v1675
    %v2445 = vunpack.c.l.b16 %v1676
    %v2446 = vunpack.c.h.b16 %v1676
    %v2447 = vunpack.c.l.b16 %v1677
    %v2448 = vunpack.c.h.b16 %v1677
    %v2449 = vunpack.c.l.b16 %v1678
    %v2450 = vunpack.c.h.b16 %v1678
    %v2451 = vunpack.c.l.b16 %v1679
    %v2452 = vunpack.c.h.b16 %v1679
    %v2453 = vunpack.c.l.b16 %v1680
    %v2454 = vunpack.c.h.b16 %v1680
    %v2455 = vunpack.c.l.b16 %v1681
    %v2456 = vunpack.c.h.b16 %v1681
    %v2457 = vunpack.c.l.b16 %v1682
    %v2458 = vunpack.c.h.b16 %v1682
    %v2459 = vunpack.c.l.b16 %v1683
    %v2460 = vunpack.c.h.b16 %v1683
    %v2461 = vunpack.c.l.b16 %v1684
    %v2462 = vunpack.c.h.b16 %v1684
    %v2463 = vunpack.c.l.b16 %v1685
    %v2464 = vunpack.c.h.b16 %v1685
    %v2465 = vunpack.c.l.b16 %v1686
    %v2466 = vunpack.c.h.b16 %v1686
    %v2467 = vunpack.c.l.b16 %v1687
    %v2468 = vunpack.c.h.b16 %v1687
    %v2469 = vunpack.c.l.b16 %v1688
    %v2470 = vunpack.c.h.b16 %v1688
    %v2471 = vunpack.c.l.b16 %v1689
    %v2472 = vunpack.c.h.b16 %v1689
    %v2473 = vunpack.c.l.b16 %v1690
    %v2474 = vunpack.c.h.b16 %v1690
    %v2475 = vunpack.c.l.b16 %v1691
    %v2476 = vunpack.c.h.b16 %v1691
    %v2477 = vunpack.c.l.b16 %v1692
    %v2478 = vunpack.c.h.b16 %v1692
    %v2479 = vunpack.c.l.b16 %v1693
    %v2480 = vunpack.c.h.b16 %v1693
    %v2481 = vpack.c.b16 %v1971, %v1969
    %v2482 = vpack.c.b16 %v1972, %v1970
    %v2483 = vpack.c.b16 %v1975, %v1973
    %v2484 = vpack.c.b16 %v1976, %v1974
    %v2485 = vpack.c.b16 %v1979, %v1977
    %v2486 = vpack.c.b16 %v1980, %v1978
    %v2487 = vpack.c.b16 %v1983, %v1981
    %v2488 = vpack.c.b16 %v1984, %v1982
    %v2489 = vpack.c.b16 %v1987, %v1985
    %v2490 = vpack.c.b16 %v1988, %v1986
    %v2491 = vpack.c.b16 %v1991, %v1989
    %v2492 = vpack.c.b16 %v1992, %v1990
    %v2493 = vpack.c.b16 %v1995, %v1993
    %v2494 = vpack.c.b16 %v1996, %v1994
    %v2495 = vpack.c.b16 %v1999, %v1997
    %v2496 = vpack.c.b16 %v2000, %v1998
    %v2497 = vpack.c.b16 %v2003, %v2001
    %v2498 = vpack.c.b16 %v2004, %v2002
    %v2499 = vpack.c.b16 %v2007, %v2005
    %v2500 = vpack.c.b16 %v2008, %v2006
    %v2501 = vpack.c.b16 %v2011, %v2009
    %v2502 = vpack.c.b16 %v2012, %v2010
    %v2503 = vpack.c.b16 %v2015, %v2013
    %v2504 = vpack.c.b16 %v2016, %v2014
    %v2505 = vpack.c.b16 %v2019, %v2017
    %v2506 = vpack.c.b16 %v2020, %v2018
    %v2507 = vpack.c.b16 %v2023, %v2021
    %v2508 = vpack.c.b16 %v2024, %v2022
    %v2509 = vpack.c.b16 %v2027, %v2025
    %v2510 = vpack.c.b16 %v2028, %v2026
    %v2511 = vpack.c.b16 %v2031, %v2029
    %v2512 = vpack.c.b16 %v2032, %v2030
    %v2513 = vpack.c.b16 %v2035, %v2033
    %v2514 = vpack.c.b16 %v2036, %v2034
    %v2515 = vpack.c.b16 %v2039, %v2037
    %v2516 = vpack.c.b16 %v2040, %v2038
    %v2517 = vpack.c.b16 %v2043, %v2041
    %v2518 = vpack.c.b16 %v2044, %v2042
    %v2519 = vpack.c.b16 %v2047, %v2045
    %v2520 = vpack.c.b16 %v2048, %v2046
    %v2521 = vpack.c.b16 %v2051, %v2049
    %v2522 = vpack.c.b16 %v2052, %v2050
    %v2523 = vpack.c.b16 %v2055, %v2053
    %v2524 = vpack.c.b16 %v2056, %v2054
    %v2525 = vpack.c.b16 %v2059, %v2057
    %v2526 = vpack.c.b16 %v2060, %v2058
    %v2527 = vpack.c.b16 %v2063, %v2061
    %v2528 = vpack.c.b16 %v2064, %v2062
    %v2529 = vpack.c.b16 %v2067, %v2065
    %v2530 = vpack.c.b16 %v2068, %v2066
    %v2531 = vpack.c.b16 %v2071, %v2069
    %v2532 = vpack.c.b16 %v2072, %v2070
    %v2533 = vpack.c.b16 %v2075, %v2073
    %v2534 = vpack.c.b16 %v2076, %v2074
    %v2535 = vpack.c.b16 %v2079, %v2077
    %v2536 = vpack.c.b16 %v2080, %v2078
    %v2537 = vpack.c.b16 %v2083, %v2081
    %v2538 = vpack.c.b16 %v2084, %v2082
    %v2539 = vpack.c.b16 %v2087, %v2085
    %v2540 = vpack.c.b16 %v2088, %v2086
    %v2541 = vpack.c.b16 %v2091, %v2089
    %v2542 = vpack.c.b16 %v2092, %v2090
    %v2543 = vpack.c.b16 %v2095, %v2093
    %v2544 = vpack.c.b16 %v2096, %v2094
    %v2545 = vpack.c.b16 %v2099, %v2097
    %v2546 = vpack.c.b16 %v2100, %v2098
    %v2547 = vpack.c.b16 %v2103, %v2101
    %v2548 = vpack.c.b16 %v2104, %v2102
    %v2549 = vpack.c.b16 %v2107, %v2105
    %v2550 = vpack.c.b16 %v2108, %v2106
    %v2551 = vpack.c.b16 %v2111, %v2109
    %v2552 = vpack.c.b16 %v2112, %v2110
    %v2553 = vpack.c.b16 %v2115, %v2113
    %v2554 = vpack.c.b16 %v2116, %v2114
    %v2555 = vpack.c.b16 %v2119, %v2117
    %v2556 = vpack.c.b16 %v2120, %v2118
    %v2557 = vpack.c.b16 %v2123, %v2121
    %v2558 = vpack.c.b16 %v2124, %v2122
    %v2559 = vpack.c.b16 %v2127, %v2125
    %v2560 = vpack.c.b16 %v2128, %v2126
    %v2561 = vpack.c.b16 %v2131, %v2129
    %v2562 = vpack.c.b16 %v2132, %v2130
    %v2563 = vpack.c.b16 %v2135, %v2133
    %v2564 = vpack.c.b16 %v2136, %v2134
    %v2565 = vpack.c.b16 %v2139, %v2137
    %v2566 = vpack.c.b16 %v2140, %v2138
    %v2567 = vpack.c.b16 %v2143, %v2141
    %v2568 = vpack.c.b16 %v2144, %v2142
    %v2569 = vpack.c.b16 %v2147, %v2145
    %v2570 = vpack.c.b16 %v2148, %v2146
    %v2571 = vpack.c.b16 %v2151, %v2149
    %v2572 = vpack.c.b16 %v2152, %v2150
    %v2573 = vpack.c.b16 %v2155, %v2153
    %v2574 = vpack.c.b16 %v2156, %v2154
    %v2575 = vpack.c.b16 %v2159, %v2157
    %v2576 = vpack.c.b16 %v2160, %v2158
    %v2577 = vpack.c.b16 %v2163, %v2161
    %v2578 = vpack.c.b16 %v2164, %v2162
    %v2579 = vpack.c.b16 %v2167, %v2165
    %v2580 = vpack.c.b16 %v2168, %v2166
    %v2581 = vpack.c.b16 %v2171, %v2169
    %v2582 = vpack.c.b16 %v2172, %v2170
    %v2583 = vpack.c.b16 %v2175, %v2173
    %v2584 = vpack.c.b16 %v2176, %v2174
    %v2585 = vpack.c.b16 %v2179, %v2177
    %v2586 = vpack.c.b16 %v2180, %v2178
    %v2587 = vpack.c.b16 %v2183, %v2181
    %v2588 = vpack.c.b16 %v2184, %v2182
    %v2589 = vpack.c.b16 %v2187, %v2185
    %v2590 = vpack.c.b16 %v2188, %v2186
    %v2591 = vpack.c.b16 %v2191, %v2189
    %v2592 = vpack.c.b16 %v2192, %v2190
    %v2593 = vpack.c.b16 %v2195, %v2193
    %v2594 = vpack.c.b16 %v2196, %v2194
    %v2595 = vpack.c.b16 %v2199, %v2197
    %v2596 = vpack.c.b16 %v2200, %v2198
    %v2597 = vpack.c.b16 %v2203, %v2201
    %v2598 = vpack.c.b16 %v2204, %v2202
    %v2599 = vpack.c.b16 %v2207, %v2205
    %v2600 = vpack.c.b16 %v2208, %v2206
    %v2601 = vpack.c.b16 %v2211, %v2209
    %v2602 = vpack.c.b16 %v2212, %v2210
    %v2603 = vpack.c.b16 %v2215, %v2213
    %v2604 = vpack.c.b16 %v2216, %v2214
    %v2605 = vpack.c.b16 %v2219, %v2217
    %v2606 = vpack.c.b16 %v2220, %v2218
    %v2607 = vpack.c.b16 %v2223, %v2221
    %v2608 = vpack.c.b16 %v2224, %v2222
    %v2609 = vpack.c.b16 %v2227, %v2225
    %v2610 = vpack.c.b16 %v2228, %v2226
    %v2611 = vpack.c.b16 %v2231, %v2229
    %v2612 = vpack.c.b16 %v2232, %v2230
    %v2613 = vpack.c.b16 %v2235, %v2233
    %v2614 = vpack.c.b16 %v2236, %v2234
    %v2615 = vpack.c.b16 %v2239, %v2237
    %v2616 = vpack.c.b16 %v2240, %v2238
    %v2617 = vpack.c.b16 %v2243, %v2241
    %v2618 = vpack.c.b16 %v2244, %v2242
    %v2619 = vpack.c.b16 %v2247, %v2245
    %v2620 = vpack.c.b16 %v2248, %v2246
    %v2621 = vpack.c.b16 %v2251, %v2249
    %v2622 = vpack.c.b16 %v2252, %v2250
    %v2623 = vpack.c.b16 %v2255, %v2253
    %v2624 = vpack.c.b16 %v2256, %v2254
    %v2625 = vpack.c.b16 %v2259, %v2257
    %v2626 = vpack.c.b16 %v2260, %v2258
    %v2627 = vpack.c.b16 %v2263, %v2261
    %v2628 = vpack.c.b16 %v2264, %v2262
    %v2629 = vpack.c.b16 %v2267, %v2265
    %v2630 = vpack.c.b16 %v2268, %v2266
    %v2631 = vpack.c.b16 %v2271, %v2269
    %v2632 = vpack.c.b16 %v2272, %v2270
    %v2633 = vpack.c.b16 %v2275, %v2273
    %v2634 = vpack.c.b16 %v2276, %v2274
    %v2635 = vpack.c.b16 %v2279, %v2277
    %v2636 = vpack.c.b16 %v2280, %v2278
    %v2637 = vpack.c.b16 %v2283, %v2281
    %v2638 = vpack.c.b16 %v2284, %v2282
    %v2639 = vpack.c.b16 %v2287, %v2285
    %v2640 = vpack.c.b16 %v2288, %v2286
    %v2641 = vpack.c.b16 %v2291, %v2289
    %v2642 = vpack.c.b16 %v2292, %v2290
    %v2643 = vpack.c.b16 %v2295, %v2293
    %v2644 = vpack.c.b16 %v2296, %v2294
    %v2645 = vpack.c.b16 %v2299, %v2297
    %v2646 = vpack.c.b16 %v2300, %v2298
    %v2647 = vpack.c.b16 %v2303, %v2301
    %v2648 = vpack.c.b16 %v2304, %v2302
    %v2649 = vpack.c.b16 %v2307, %v2305
    %v2650 = vpack.c.b16 %v2308, %v2306
    %v2651 = vpack.c.b16 %v2311, %v2309
    %v2652 = vpack.c.b16 %v2312, %v2310
    %v2653 = vpack.c.b16 %v2315, %v2313
    %v2654 = vpack.c.b16 %v2316, %v2314
    %v2655 = vpack.c.b16 %v2319, %v2317
    %v2656 = vpack.c.b16 %v2320, %v2318
    %v2657 = vpack.c.b16 %v2323, %v2321
    %v2658 = vpack.c.b16 %v2324, %v2322
    %v2659 = vpack.c.b16 %v2327, %v2325
    %v2660 = vpack.c.b16 %v2328, %v2326
    %v2661 = vpack.c.b16 %v2331, %v2329
    %v2662 = vpack.c.b16 %v2332, %v2330
    %v2663 = vpack.c.b16 %v2335, %v2333
    %v2664 = vpack.c.b16 %v2336, %v2334
    %v2665 = vpack.c.b16 %v2339, %v2337
    %v2666 = vpack.c.b16 %v2340, %v2338
    %v2667 = vpack.c.b16 %v2343, %v2341
    %v2668 = vpack.c.b16 %v2344, %v2342
    %v2669 = vpack.c.b16 %v2347, %v2345
    %v2670 = vpack.c.b16 %v2348, %v2346
    %v2671 = vpack.c.b16 %v2351, %v2349
    %v2672 = vpack.c.b16 %v2352, %v2350
    %v2673 = vpack.c.b16 %v2355, %v2353
    %v2674 = vpack.c.b16 %v2356, %v2354
    %v2675 = vpack.c.b16 %v2359, %v2357
    %v2676 = vpack.c.b16 %v2360, %v2358
    %v2677 = vpack.c.b16 %v2363, %v2361
    %v2678 = vpack.c.b16 %v2364, %v2362
    %v2679 = vpack.c.b16 %v2367, %v2365
    %v2680 = vpack.c.b16 %v2368, %v2366
    %v2681 = vpack.c.b16 %v2371, %v2369
    %v2682 = vpack.c.b16 %v2372, %v2370
    %v2683 = vpack.c.b16 %v2375, %v2373
    %v2684 = vpack.c.b16 %v2376, %v2374
    %v2685 = vpack.c.b16 %v2379, %v2377
    %v2686 = vpack.c.b16 %v2380, %v2378
    %v2687 = vpack.c.b16 %v2383, %v2381
    %v2688 = vpack.c.b16 %v2384, %v2382
    %v2689 = vpack.c.b16 %v2387, %v2385
    %v2690 = vpack.c.b16 %v2388, %v2386
    %v2691 = vpack.c.b16 %v2391, %v2389
    %v2692 = vpack.c.b16 %v2392, %v2390
    %v2693 = vpack.c.b16 %v2395, %v2393
    %v2694 = vpack.c.b16 %v2396, %v2394
    %v2695 = vpack.c.b16 %v2399, %v2397
    %v2696 = vpack.c.b16 %v2400, %v2398
    %v2697 = vpack.c.b16 %v2403, %v2401
    %v2698 = vpack.c.b16 %v2404, %v2402
    %v2699 = vpack.c.b16 %v2407, %v2405
    %v2700 = vpack.c.b16 %v2408, %v2406
    %v2701 = vpack.c.b16 %v2411, %v2409
    %v2702 = vpack.c.b16 %v2412, %v2410
    %v2703 = vpack.c.b16 %v2415, %v2413
    %v2704 = vpack.c.b16 %v2416, %v2414
    %v2705 = vpack.c.b16 %v2419, %v2417
    %v2706 = vpack.c.b16 %v2420, %v2418
    %v2707 = vpack.c.b16 %v2423, %v2421
    %v2708 = vpack.c.b16 %v2424, %v2422
    %v2709 = vpack.c.b16 %v2427, %v2425
    %v2710 = vpack.c.b16 %v2428, %v2426
    %v2711 = vpack.c.b16 %v2431, %v2429
    %v2712 = vpack.c.b16 %v2432, %v2430
    %v2713 = vpack.c.b16 %v2435, %v2433
    %v2714 = vpack.c.b16 %v2436, %v2434
    %v2715 = vpack.c.b16 %v2439, %v2437
    %v2716 = vpack.c.b16 %v2440, %v2438
    %v2717 = vpack.c.b16 %v2443, %v2441
    %v2718 = vpack.c.b16 %v2444, %v2442
    %v2719 = vpack.c.b16 %v2447, %v2445
    %v2720 = vpack.c.b16 %v2448, %v2446
    %v2721 = vpack.c.b16 %v2451, %v2449
    %v2722 = vpack.c.b16 %v2452, %v2450
    %v2723 = vpack.c.b16 %v2455, %v2453
    %v2724 = vpack.c.b16 %v2456, %v2454
    %v2725 = vpack.c.b16 %v2459, %v2457
    %v2726 = vpack.c.b16 %v2460, %v2458
    %v2727 = vpack.c.b16 %v2463, %v2461
    %v2728 = vpack.c.b16 %v2464, %v2462
    %v2729 = vpack.c.b16 %v2467, %v2465
    %v2730 = vpack.c.b16 %v2468, %v2466
    %v2731 = vpack.c.b16 %v2471, %v2469
    %v2732 = vpack.c.b16 %v2472, %v2470
    %v2733 = vpack.c.b16 %v2475, %v2473
    %v2734 = vpack.c.b16 %v2476, %v2474
    %v2735 = vpack.c.b16 %v2479, %v2477
    %v2736 = vpack.c.b16 %v2480, %v2478
    %2993 = vmatprep.subr.bf16.mxu0 %v2482
    %2994 = vmatpush1.bf16.msra.mxu0 %v2481
    %2995 = vmatprep.subr.bf16.mxu0 %v2484
    %2996 = vmatpush1.bf16.msra.mxu0 %v2483
    %2997 = vmatprep.subr.bf16.mxu0 %v2486
    %2998 = vmatpush1.bf16.msra.mxu0 %v2485
    %2999 = vmatprep.subr.bf16.mxu0 %v2488
    %3000 = vmatpush1.bf16.msra.mxu0 %v2487
    %3001 = vmatprep.subr.bf16.mxu0 %v2490
    %3002 = vmatpush1.bf16.msra.mxu0 %v2489
    %3003 = vmatprep.subr.bf16.mxu0 %v2492
    %3004 = vmatpush1.bf16.msra.mxu0 %v2491
    %3005 = vmatprep.subr.bf16.mxu0 %v2494
    %3006 = vmatpush1.bf16.msra.mxu0 %v2493
    %3007 = vmatprep.subr.bf16.mxu0 %v2496
    %3008 = vmatpush1.bf16.msra.mxu0 %v2495
    %3009 = vmatprep.subr.bf16.mxu0 %v2498
    %3010 = vmatpush1.bf16.msra.mxu0 %v2497
    %3011 = vmatprep.subr.bf16.mxu0 %v2500
    %3012 = vmatpush1.bf16.msra.mxu0 %v2499
    %3013 = vmatprep.subr.bf16.mxu0 %v2502
    %3014 = vmatpush1.bf16.msra.mxu0 %v2501
    %3015 = vmatprep.subr.bf16.mxu0 %v2504
    %3016 = vmatpush1.bf16.msra.mxu0 %v2503
    %3017 = vmatprep.subr.bf16.mxu0 %v2506
    %3018 = vmatpush1.bf16.msra.mxu0 %v2505
    %3019 = vmatprep.subr.bf16.mxu0 %v2508
    %3020 = vmatpush1.bf16.msra.mxu0 %v2507
    %3021 = vmatprep.subr.bf16.mxu0 %v2510
    %3022 = vmatpush1.bf16.msra.mxu0 %v2509
    %3023 = vmatprep.subr.bf16.mxu0 %v2512
    %3024 = vmatpush1.bf16.msra.mxu0 %v2511
    %3025 = vmatprep.mubr.bf16.mxu0 %v1422
    %3026 = vmatmul.mubr.bf16.gmra.mrb[0].mxu0 %v1421
    %v3027 = vpop.f32.mrb[0].mxu0
    %v3028 = vadd.f32 %v1708, %v3027
    %v3029 = vpop.f32.mrb[0].mxu0
    %v3030 = vadd.f32 %v1712, %v3029
    %v3031 = vpop.f32.mrb[0].mxu0
    %v3032 = vadd.f32 %v1708, %v3031
    %v3033 = vpop.f32.mrb[0].mxu0
    %v3034 = vadd.f32 %v1712, %v3033
    %3035 = vdwg.mxu0
    %3036 = vmatprep.subr.bf16.mxu0 %v2514
    %3037 = vmatpush1.bf16.msra.mxu0 %v2513
    %3038 = vmatprep.subr.bf16.mxu0 %v2516
    %3039 = vmatpush1.bf16.msra.mxu0 %v2515
    %3040 = vmatprep.subr.bf16.mxu0 %v2518
    %3041 = vmatpush1.bf16.msra.mxu0 %v2517
    %3042 = vmatprep.subr.bf16.mxu0 %v2520
    %3043 = vmatpush1.bf16.msra.mxu0 %v2519
    %3044 = vmatprep.subr.bf16.mxu0 %v2522
    %3045 = vmatpush1.bf16.msra.mxu0 %v2521
    %3046 = vmatprep.subr.bf16.mxu0 %v2524
    %3047 = vmatpush1.bf16.msra.mxu0 %v2523
    %3048 = vmatprep.subr.bf16.mxu0 %v2526
    %3049 = vmatpush1.bf16.msra.mxu0 %v2525
    %3050 = vmatprep.subr.bf16.mxu0 %v2528
    %3051 = vmatpush1.bf16.msra.mxu0 %v2527
    %3052 = vmatprep.subr.bf16.mxu0 %v2530
    %3053 = vmatpush1.bf16.msra.mxu0 %v2529
    %3054 = vmatprep.subr.bf16.mxu0 %v2532
    %3055 = vmatpush1.bf16.msra.mxu0 %v2531
    %3056 = vmatprep.subr.bf16.mxu0 %v2534
    %3057 = vmatpush1.bf16.msra.mxu0 %v2533
    %3058 = vmatprep.subr.bf16.mxu0 %v2536
    %3059 = vmatpush1.bf16.msra.mxu0 %v2535
    %3060 = vmatprep.subr.bf16.mxu0 %v2538
    %3061 = vmatpush1.bf16.msra.mxu0 %v2537
    %3062 = vmatprep.subr.bf16.mxu0 %v2540
    %3063 = vmatpush1.bf16.msra.mxu0 %v2539
    %3064 = vmatprep.subr.bf16.mxu0 %v2542
    %3065 = vmatpush1.bf16.msra.mxu0 %v2541
    %3066 = vmatprep.subr.bf16.mxu0 %v2544
    %3067 = vmatpush1.bf16.msra.mxu0 %v2543
    %3068 = vmatprep.mubr.bf16.mxu0 %v1424
    %3069 = vmatmul.mubr.bf16.gmra.mrb[0].mxu0 %v1423
    %v3070 = vpop.f32.mrb[0].mxu0
    %v3071 = vadd.f32 %v3028, %v3070
    %v3072 = vpop.f32.mrb[0].mxu0
    %v3073 = vadd.f32 %v3030, %v3072
    %v3074 = vpop.f32.mrb[0].mxu0
    %v3075 = vadd.f32 %v3032, %v3074
    %v3076 = vpop.f32.mrb[0].mxu0
    %v3077 = vadd.f32 %v3034, %v3076
    %3078 = vdwg.mxu0
    %3079 = vmatprep.subr.bf16.mxu0 %v2546
    %3080 = vmatpush1.bf16.msra.mxu0 %v2545
    %3081 = vmatprep.subr.bf16.mxu0 %v2548
    %3082 = vmatpush1.bf16.msra.mxu0 %v2547
    %3083 = vmatprep.subr.bf16.mxu0 %v2550
    %3084 = vmatpush1.bf16.msra.mxu0 %v2549
    %3085 = vmatprep.subr.bf16.mxu0 %v2552
    %3086 = vmatpush1.bf16.msra.mxu0 %v2551
    %3087 = vmatprep.subr.bf16.mxu0 %v2554
    %3088 = vmatpush1.bf16.msra.mxu0 %v2553
    %3089 = vmatprep.subr.bf16.mxu0 %v2556
    %3090 = vmatpush1.bf16.msra.mxu0 %v2555
    %3091 = vmatprep.subr.bf16.mxu0 %v2558
    %3092 = vmatpush1.bf16.msra.mxu0 %v2557
    %3093 = vmatprep.subr.bf16.mxu0 %v2560
    %3094 = vmatpush1.bf16.msra.mxu0 %v2559
    %3095 = vmatprep.subr.bf16.mxu0 %v2562
    %3096 = vmatpush1.bf16.msra.mxu0 %v2561
    %3097 = vmatprep.subr.bf16.mxu0 %v2564
    %3098 = vmatpush1.bf16.msra.mxu0 %v2563
    %3099 = vmatprep.subr.bf16.mxu0 %v2566
    %3100 = vmatpush1.bf16.msra.mxu0 %v2565
    %3101 = vmatprep.subr.bf16.mxu0 %v2568
    %3102 = vmatpush1.bf16.msra.mxu0 %v2567
    %3103 = vmatprep.subr.bf16.mxu0 %v2570
    %3104 = vmatpush1.bf16.msra.mxu0 %v2569
    %3105 = vmatprep.subr.bf16.mxu0 %v2572
    %3106 = vmatpush1.bf16.msra.mxu0 %v2571
    %3107 = vmatprep.subr.bf16.mxu0 %v2574
    %3108 = vmatpush1.bf16.msra.mxu0 %v2573
    %3109 = vmatprep.subr.bf16.mxu0 %v2576
    %3110 = vmatpush1.bf16.msra.mxu0 %v2575
    %3111 = vmatprep.mubr.bf16.mxu0 %v1426
    %3112 = vmatmul.mubr.bf16.gmra.mrb[0].mxu0 %v1425
    %v3113 = vpop.f32.mrb[0].mxu0
    %v3114 = vadd.f32 %v3071, %v3113
    %v3115 = vpop.f32.mrb[0].mxu0
    %v3116 = vadd.f32 %v3073, %v3115
    %v3117 = vpop.f32.mrb[0].mxu0
    %v3118 = vadd.f32 %v3075, %v3117
    %v3119 = vpop.f32.mrb[0].mxu0
    %v3120 = vadd.f32 %v3077, %v3119
    %3121 = vdwg.mxu0
    %3122 = vmatprep.subr.bf16.mxu0 %v2578
    %3123 = vmatpush1.bf16.msra.mxu0 %v2577
    %3124 = vmatprep.subr.bf16.mxu0 %v2580
    %3125 = vmatpush1.bf16.msra.mxu0 %v2579
    %3126 = vmatprep.subr.bf16.mxu0 %v2582
    %3127 = vmatpush1.bf16.msra.mxu0 %v2581
    %3128 = vmatprep.subr.bf16.mxu0 %v2584
    %3129 = vmatpush1.bf16.msra.mxu0 %v2583
    %3130 = vmatprep.subr.bf16.mxu0 %v2586
    %3131 = vmatpush1.bf16.msra.mxu0 %v2585
    %3132 = vmatprep.subr.bf16.mxu0 %v2588
    %3133 = vmatpush1.bf16.msra.mxu0 %v2587
    %3134 = vmatprep.subr.bf16.mxu0 %v2590
    %3135 = vmatpush1.bf16.msra.mxu0 %v2589
    %3136 = vmatprep.subr.bf16.mxu0 %v2592
    %3137 = vmatpush1.bf16.msra.mxu0 %v2591
    %3138 = vmatprep.subr.bf16.mxu0 %v2594
    %3139 = vmatpush1.bf16.msra.mxu0 %v2593
    %3140 = vmatprep.subr.bf16.mxu0 %v2596
    %3141 = vmatpush1.bf16.msra.mxu0 %v2595
    %3142 = vmatprep.subr.bf16.mxu0 %v2598
    %3143 = vmatpush1.bf16.msra.mxu0 %v2597
    %3144 = vmatprep.subr.bf16.mxu0 %v2600
    %3145 = vmatpush1.bf16.msra.mxu0 %v2599
    %3146 = vmatprep.subr.bf16.mxu0 %v2602
    %3147 = vmatpush1.bf16.msra.mxu0 %v2601
    %3148 = vmatprep.subr.bf16.mxu0 %v2604
    %3149 = vmatpush1.bf16.msra.mxu0 %v2603
    %3150 = vmatprep.subr.bf16.mxu0 %v2606
    %3151 = vmatpush1.bf16.msra.mxu0 %v2605
    %3152 = vmatprep.subr.bf16.mxu0 %v2608
    %3153 = vmatpush1.bf16.msra.mxu0 %v2607
    %3154 = vmatprep.mubr.bf16.mxu0 %v1428
    %3155 = vmatmul.mubr.bf16.gmra.mrb[0].mxu0 %v1427
    %v3156 = vpop.f32.mrb[0].mxu0
    %v3157 = vadd.f32 %v3114, %v3156
    %v3158 = vpop.f32.mrb[0].mxu0
    %v3159 = vadd.f32 %v3116, %v3158
    %v3160 = vpop.f32.mrb[0].mxu0
    %v3161 = vadd.f32 %v3118, %v3160
    %v3162 = vpop.f32.mrb[0].mxu0
    %v3163 = vadd.f32 %v3120, %v3162
    %3164 = vdwg.mxu0
    %3165 = vmatprep.subr.bf16.mxu0 %v2610
    %3166 = vmatpush1.bf16.msra.mxu0 %v2609
    %3167 = vmatprep.subr.bf16.mxu0 %v2612
    %3168 = vmatpush1.bf16.msra.mxu0 %v2611
    %3169 = vmatprep.subr.bf16.mxu0 %v2614
    %3170 = vmatpush1.bf16.msra.mxu0 %v2613
    %3171 = vmatprep.subr.bf16.mxu0 %v2616
    %3172 = vmatpush1.bf16.msra.mxu0 %v2615
    %3173 = vmatprep.subr.bf16.mxu0 %v2618
    %3174 = vmatpush1.bf16.msra.mxu0 %v2617
    %3175 = vmatprep.subr.bf16.mxu0 %v2620
    %3176 = vmatpush1.bf16.msra.mxu0 %v2619
    %3177 = vmatprep.subr.bf16.mxu0 %v2622
    %3178 = vmatpush1.bf16.msra.mxu0 %v2621
    %3179 = vmatprep.subr.bf16.mxu0 %v2624
    %3180 = vmatpush1.bf16.msra.mxu0 %v2623
    %3181 = vmatprep.subr.bf16.mxu0 %v2626
    %3182 = vmatpush1.bf16.msra.mxu0 %v2625
    %3183 = vmatprep.subr.bf16.mxu0 %v2628
    %3184 = vmatpush1.bf16.msra.mxu0 %v2627
    %3185 = vmatprep.subr.bf16.mxu0 %v2630
    %3186 = vmatpush1.bf16.msra.mxu0 %v2629
    %3187 = vmatprep.subr.bf16.mxu0 %v2632
    %3188 = vmatpush1.bf16.msra.mxu0 %v2631
    %3189 = vmatprep.subr.bf16.mxu0 %v2634
    %3190 = vmatpush1.bf16.msra.mxu0 %v2633
    %3191 = vmatprep.subr.bf16.mxu0 %v2636
    %3192 = vmatpush1.bf16.msra.mxu0 %v2635
    %3193 = vmatprep.subr.bf16.mxu0 %v2638
    %3194 = vmatpush1.bf16.msra.mxu0 %v2637
    %3195 = vmatprep.subr.bf16.mxu0 %v2640
    %3196 = vmatpush1.bf16.msra.mxu0 %v2639
    %3197 = vmatprep.mubr.bf16.mxu0 %v1430
    %3198 = vmatmul.mubr.bf16.gmra.mrb[0].mxu0 %v1429
    %v3199 = vpop.f32.mrb[0].mxu0
    %v3200 = vadd.f32 %v3157, %v3199
    %v3201 = vpop.f32.mrb[0].mxu0
    %v3202 = vadd.f32 %v3159, %v3201
    %v3203 = vpop.f32.mrb[0].mxu0
    %v3204 = vadd.f32 %v3161, %v3203
    %v3205 = vpop.f32.mrb[0].mxu0
    %v3206 = vadd.f32 %v3163, %v3205
    %3207 = vdwg.mxu0
    %3208 = vmatprep.subr.bf16.mxu0 %v2642
    %3209 = vmatpush1.bf16.msra.mxu0 %v2641
    %3210 = vmatprep.subr.bf16.mxu0 %v2644
    %3211 = vmatpush1.bf16.msra.mxu0 %v2643
    %3212 = vmatprep.subr.bf16.mxu0 %v2646
    %3213 = vmatpush1.bf16.msra.mxu0 %v2645
    %3214 = vmatprep.subr.bf16.mxu0 %v2648
    %3215 = vmatpush1.bf16.msra.mxu0 %v2647
    %3216 = vmatprep.subr.bf16.mxu0 %v2650
    %3217 = vmatpush1.bf16.msra.mxu0 %v2649
    %3218 = vmatprep.subr.bf16.mxu0 %v2652
    %3219 = vmatpush1.bf16.msra.mxu0 %v2651
    %3220 = vmatprep.subr.bf16.mxu0 %v2654
    %3221 = vmatpush1.bf16.msra.mxu0 %v2653
    %3222 = vmatprep.subr.bf16.mxu0 %v2656
    %3223 = vmatpush1.bf16.msra.mxu0 %v2655
    %3224 = vmatprep.subr.bf16.mxu0 %v2658
    %3225 = vmatpush1.bf16.msra.mxu0 %v2657
    %3226 = vmatprep.subr.bf16.mxu0 %v2660
    %3227 = vmatpush1.bf16.msra.mxu0 %v2659
    %3228 = vmatprep.subr.bf16.mxu0 %v2662
    %3229 = vmatpush1.bf16.msra.mxu0 %v2661
    %3230 = vmatprep.subr.bf16.mxu0 %v2664
    %3231 = vmatpush1.bf16.msra.mxu0 %v2663
    %3232 = vmatprep.subr.bf16.mxu0 %v2666
    %3233 = vmatpush1.bf16.msra.mxu0 %v2665
    %3234 = vmatprep.subr.bf16.mxu0 %v2668
    %3235 = vmatpush1.bf16.msra.mxu0 %v2667
    %3236 = vmatprep.subr.bf16.mxu0 %v2670
    %3237 = vmatpush1.bf16.msra.mxu0 %v2669
    %3238 = vmatprep.subr.bf16.mxu0 %v2672
    %3239 = vmatpush1.bf16.msra.mxu0 %v2671
    %3240 = vmatprep.mubr.bf16.mxu0 %v1432
    %3241 = vmatmul.mubr.bf16.gmra.mrb[0].mxu0 %v1431
    %v3242 = vpop.f32.mrb[0].mxu0
    %v3243 = vadd.f32 %v3200, %v3242
    %v3244 = vpop.f32.mrb[0].mxu0
    %v3245 = vadd.f32 %v3202, %v3244
    %v3246 = vpop.f32.mrb[0].mxu0
    %v3247 = vadd.f32 %v3204, %v3246
    %v3248 = vpop.f32.mrb[0].mxu0
    %v3249 = vadd.f32 %v3206, %v3248
    %3250 = vdwg.mxu0
    %3251 = vmatprep.subr.bf16.mxu0 %v2674
    %3252 = vmatpush1.bf16.msra.mxu0 %v2673
    %3253 = vmatprep.subr.bf16.mxu0 %v2676
    %3254 = vmatpush1.bf16.msra.mxu0 %v2675
    %3255 = vmatprep.subr.bf16.mxu0 %v2678
    %3256 = vmatpush1.bf16.msra.mxu0 %v2677
    %3257 = vmatprep.subr.bf16.mxu0 %v2680
    %3258 = vmatpush1.bf16.msra.mxu0 %v2679
    %3259 = vmatprep.subr.bf16.mxu0 %v2682
    %3260 = vmatpush1.bf16.msra.mxu0 %v2681
    %3261 = vmatprep.subr.bf16.mxu0 %v2684
    %3262 = vmatpush1.bf16.msra.mxu0 %v2683
    %3263 = vmatprep.subr.bf16.mxu0 %v2686
    %3264 = vmatpush1.bf16.msra.mxu0 %v2685
    %3265 = vmatprep.subr.bf16.mxu0 %v2688
    %3266 = vmatpush1.bf16.msra.mxu0 %v2687
    %3267 = vmatprep.subr.bf16.mxu0 %v2690
    %3268 = vmatpush1.bf16.msra.mxu0 %v2689
    %3269 = vmatprep.subr.bf16.mxu0 %v2692
    %3270 = vmatpush1.bf16.msra.mxu0 %v2691
    %3271 = vmatprep.subr.bf16.mxu0 %v2694
    %3272 = vmatpush1.bf16.msra.mxu0 %v2693
    %3273 = vmatprep.subr.bf16.mxu0 %v2696
    %3274 = vmatpush1.bf16.msra.mxu0 %v2695
    %3275 = vmatprep.subr.bf16.mxu0 %v2698
    %3276 = vmatpush1.bf16.msra.mxu0 %v2697
    %3277 = vmatprep.subr.bf16.mxu0 %v2700
    %3278 = vmatpush1.bf16.msra.mxu0 %v2699
    %3279 = vmatprep.subr.bf16.mxu0 %v2702
    %3280 = vmatpush1.bf16.msra.mxu0 %v2701
    %3281 = vmatprep.subr.bf16.mxu0 %v2704
    %3282 = vmatpush1.bf16.msra.mxu0 %v2703
    %3283 = vmatprep.mubr.bf16.mxu0 %v1434
    %3284 = vmatmul.mubr.bf16.gmra.mrb[0].mxu0 %v1433
    %v3285 = vpop.f32.mrb[0].mxu0
    %v3286 = vadd.f32 %v3243, %v3285
    %v3287 = vpop.f32.mrb[0].mxu0
    %v3288 = vadd.f32 %v3245, %v3287
    %v3289 = vpop.f32.mrb[0].mxu0
    %v3290 = vadd.f32 %v3247, %v3289
    %v3291 = vpop.f32.mrb[0].mxu0
    %v3292 = vadd.f32 %v3249, %v3291
    %3293 = vdwg.mxu0
    %3294 = vmatprep.subr.bf16.mxu0 %v2706
    %3295 = vmatpush1.bf16.msra.mxu0 %v2705
    %3296 = vmatprep.subr.bf16.mxu0 %v2708
    %3297 = vmatpush1.bf16.msra.mxu0 %v2707
    %3298 = vmatprep.subr.bf16.mxu0 %v2710
    %3299 = vmatpush1.bf16.msra.mxu0 %v2709
    %3300 = vmatprep.subr.bf16.mxu0 %v2712
    %3301 = vmatpush1.bf16.msra.mxu0 %v2711
    %3302 = vmatprep.subr.bf16.mxu0 %v2714
    %3303 = vmatpush1.bf16.msra.mxu0 %v2713
    %3304 = vmatprep.subr.bf16.mxu0 %v2716
    %3305 = vmatpush1.bf16.msra.mxu0 %v2715
    %3306 = vmatprep.subr.bf16.mxu0 %v2718
    %3307 = vmatpush1.bf16.msra.mxu0 %v2717
    %3308 = vmatprep.subr.bf16.mxu0 %v2720
    %3309 = vmatpush1.bf16.msra.mxu0 %v2719
    %3310 = vmatprep.subr.bf16.mxu0 %v2722
    %3311 = vmatpush1.bf16.msra.mxu0 %v2721
    %3312 = vmatprep.subr.bf16.mxu0 %v2724
    %3313 = vmatpush1.bf16.msra.mxu0 %v2723
    %3314 = vmatprep.subr.bf16.mxu0 %v2726
    %3315 = vmatpush1.bf16.msra.mxu0 %v2725
    %3316 = vmatprep.subr.bf16.mxu0 %v2728
    %3317 = vmatpush1.bf16.msra.mxu0 %v2727
    %3318 = vmatprep.subr.bf16.mxu0 %v2730
    %3319 = vmatpush1.bf16.msra.mxu0 %v2729
    %3320 = vmatprep.subr.bf16.mxu0 %v2732
    %3321 = vmatpush1.bf16.msra.mxu0 %v2731
    %3322 = vmatprep.subr.bf16.mxu0 %v2734
    %3323 = vmatpush1.bf16.msra.mxu0 %v2733
    %3324 = vmatprep.subr.bf16.mxu0 %v2736
    %3325 = vmatpush1.bf16.msra.mxu0 %v2735
    %3326 = vmatprep.mubr.bf16.mxu0 %v1436
    %3327 = vmatmul.mubr.bf16.gmra.mrb[0].mxu0 %v1435
    %v3328 = vpop.f32.mrb[0].mxu0
    %v3329 = vadd.f32 %v3286, %v3328
    %v3330 = vpop.f32.mrb[0].mxu0
    %v3331 = vadd.f32 %v3288, %v3330
    %v3332 = vpop.f32.mrb[0].mxu0
    %v3333 = vadd.f32 %v3290, %v3332
    %v3334 = vpop.f32.mrb[0].mxu0
    %v3335 = vadd.f32 %v3292, %v3334
    %3336 = vdwg.mxu0
    %v3337 = vadd.f32 %v3329, %v3331
    %3338 = vadd.xlane.f32.xlu0 %v3337
    %v3339 = vpop.xlane.xlu0 %3338
    %v3340 = vadd.f32 %v3333, %v3335
    %3341 = vadd.xlane.f32.xlu0 %v3340
    %v3342 = vpop.xlane.xlu0 %3341
    %v3343 = vmul.f32 %v3339, 0.00390625
    %v3344 = vmul.f32 %v3342, 0.00390625
    %v3345 = vmul.f32 %v3329, %v3329
    %v3346 = vmul.f32 %v3331, %v3331
    %v3347 = vmul.f32 %v3333, %v3333
    %v3348 = vmul.f32 %v3335, %v3335
    %v3349 = vadd.f32 %v3345, %v3346
    %3350 = vadd.xlane.f32.xlu0 %v3349
    %v3351 = vpop.xlane.xlu0 %3350
    %v3352 = vadd.f32 %v3347, %v3348
    %3353 = vadd.xlane.f32.xlu0 %v3352
    %v3354 = vpop.xlane.xlu0 %3353
    %v3355 = vmul.f32 %v3351, 0.00390625
    %v3356 = vmul.f32 %v3354, 0.00390625
    %v3357 = vmul.f32 %v3343, %v3343
    %v3358 = vmul.f32 %v3344, %v3344
    %v3359 = vsub.f32 %v3355, %v3357
    %v3360 = vsub.f32 %v3356, %v3358
    %v3361 = vmax.f32 %v3359, 0.0
    %v3362 = vmax.f32 %v3360, 0.0
    %v3363 = vadd.f32 %v3361, 1e-05
    %v3364 = vadd.f32 %v3362, 1e-05
    %v3365 = vrsqrt.pop %v3363
    %v3366 = vrsqrt.pop %v3364
    %v3367 = vsub.f32 %v3329, %v3343
    %v3368 = vsub.f32 %v3331, %v3343
    %v3369 = vsub.f32 %v3333, %v3344
    %v3370 = vsub.f32 %v3335, %v3344
    %v3371 = vmul.f32 %v3367, %v3365
    %v3372 = vmul.f32 %v3368, %v3365
    %v3373 = vmul.f32 %v3369, %v3366
    %v3374 = vmul.f32 %v3370, %v3366
    %v3375 = vlaneseq
    %v3376 = vshrl.u32 %v3375, 7
    %v3377 = vsub.s32 1, %v3376
    %v3378 = vrot.slane %v1437, %v3377
    %v3379 = vlaneseq
    %v3380 = vshrl.u32 %v3379, 7
    %v3381 = vsub.s32 5, %v3380
    %v3382 = vrot.slane %v1437, %v3381
    %v3385 = vlaneseq
    %v3386 = vshrl.u32 %v3385, 7
    %v3387 = vsub.s32 1, %v3386
    %v3388 = vrot.slane %v3378, %v3387
    %v3389 = vlaneseq
    %v3390 = vshrl.u32 %v3389, 7
    %v3391 = vsub.s32 1, %v3390
    %v3392 = vrot.slane %v3382, %v3391
    %v3393 = vmul.f32 %v3371, %v3388
    %v3394 = vmul.f32 %v3372, %v3392
    %v3395 = vmul.f32 %v3373, %v3388
    %v3396 = vmul.f32 %v3374, %v3392
    %v3397 = vlaneseq
    %v3398 = vshrl.u32 %v3397, 7
    %v3399 = vsub.s32 2, %v3398
    %v3400 = vrot.slane %v1437, %v3399
    %v3401 = vlaneseq
    %v3402 = vshrl.u32 %v3401, 7
    %v3403 = vsub.s32 6, %v3402
    %v3404 = vrot.slane %v1437, %v3403
    %v3407 = vlaneseq
    %v3408 = vshrl.u32 %v3407, 7
    %v3409 = vsub.s32 2, %v3408
    %v3410 = vrot.slane %v3400, %v3409
    %v3411 = vlaneseq
    %v3412 = vshrl.u32 %v3411, 7
    %v3413 = vsub.s32 2, %v3412
    %v3414 = vrot.slane %v3404, %v3413
    %v3415 = vadd.f32 %v3393, %v3410
    %v3416 = vadd.f32 %v3394, %v3414
    %v3417 = vadd.f32 %v3395, %v3410
    %v3418 = vadd.f32 %v3396, %v3414
    %3419 = vst [vmem:[#allocation10] sm:$0xff] %v3415
    %3420 = vst [vmem:[#allocation10 + $0x8] sm:$0xff] %v3416
    %3421 = vst [vmem:[#allocation10 + $0x10] sm:$0xff] %v3417
    %3422 = vst [vmem:[#allocation10 + $0x18] sm:$0xff] %v3418
    // Predicated region
    $region38: #{to_clip_mlp.1} parent=1 // pred_check
      _
    $region39: #{to_clip_mlp.1} parent=1 // pred_check_branch
      %3424 = sbr.rel (0) target = $region41
    $region40: #{to_clip_mlp.1} parent=1 // pred_region
      %s3426 = ssub.s32 512, 512
      %3427 = vsyncadd [#allocation4], %s3426
      %s3428 = sshll.u32 [#allocation10], 4
      %s3429 = int_to_ptr.vmem [resolvable:$true] %s3428
      %3434 = dma.vmem_to_hbm [thread:$0]  %s3429, 512, %s5, [#allocation4], 256, 256, 16
    $region41: #{to_clip_mlp.1} parent=1 // pred_fallthru
      _
    // Predicated region
    $region42: #{to_clip_mlp.1} parent=1 // pred_check
      _
    $region43: #{to_clip_mlp.1} parent=1 // pred_check_branch
      %3436 = sbr.rel (0) target = $region45
    $region44: #{to_clip_mlp.1} parent=1 // pred_region
      %3437 = dma.done [#allocation4], 512
    $region45: #{to_clip_mlp.1} parent=1 // pred_fallthru
      _
    %3438 = vsyncpa [#allocation3], 1
    %3439 = vsyncpa [#allocation6], 1
    %3440 = vsyncpa [#allocation9], 1
    %3441 = vsyncpa [#allocation4], 1

</llo_original>
